<compile_context>
chip_gen: v7x
topology: tpu7x:2x2x1
jax: 0.10.0
libtpu: 0.0.40
codegen_flags: <defaults>
</compile_context>

<pallas_src>
import jax
import jax.numpy as jnp
from jax.experimental import pallas as pl
from jax.experimental.pallas import tpu as pltpu


# ----------------------------------------------------------------------------
# Centered (ortho) DFT matrix:  fft2c(X) = Fh @ X @ Mw^T.
# The inverse (ifft2c) matrices are the complex conjugates of these, which is
# exploited inside the kernel (conjugate symmetry of the centered ortho DFT).
# ----------------------------------------------------------------------------
def _centered_dft_mat(n):
    eye = jnp.eye(n, dtype=jnp.complex64)
    fwd = jnp.fft.fftshift(
        jnp.fft.fft(jnp.fft.ifftshift(eye, axes=0), axis=0, norm="ortho"), axes=0)
    return fwd


# ----------------------------------------------------------------------------
# Pallas kernel: one batch chunk (nb images, folded into the lane axis) per
# grid step.  Refs:
#   m_ref  : (H, nb*W)      sampling mask (batch folded into lanes)
#   x_ref  : (2, H, nb*W)   x_rec   real/imag planes
#   xk_ref : (2, H, nb*W)   xk_under real/imag planes
#   fh_ref : (2, H, H)      row-DFT matrix  [real, imag]
#   gw_ref : (2, W, W)      Mw^T            [real, imag]
#   out_ref: (2, H, nb*W)
#   u_scr  : (2, H, nb*W)   VMEM scratch for the ifft column-pass result
# ----------------------------------------------------------------------------
def _dc_kernel(m_ref, x_ref, xk_ref, fh_ref, gw_ref, out_ref, u_scr):
    f32 = jnp.float32
    fhr, fhi = fh_ref[0], fh_ref[1]
    gwr, gwi = gw_ref[0], gw_ref[1]
    # Gauss-trick pre-combines (sum for forward, difference for conjugate/inverse).
    fhs, fhd = fhr + fhi, fhr - fhi
    gws, gwd = gwr + gwi, gwr - gwi

    W = gw_ref.shape[-1]
    nbw = x_ref.shape[-1]
    nb = nbw // W

    def dot(a, b):
        return jnp.dot(a, b, preferred_element_type=f32)

    # ---- forward row pass, widened over the batch chunk:  T = Fh @ X -------
    xr, xi = x_ref[0], x_ref[1]
    t1, t2, t3 = dot(fhr, xr), dot(fhi, xi), dot(fhs, xr + xi)
    tr, ti = t1 - t2, t3 - t1 - t2

    m = m_ref[...]
    xkr, xki = xk_ref[0], xk_ref[1]

    # ---- per-image column passes + data consistency -------------------------
    for n in range(nb):
        sl = slice(n * W, (n + 1) * W)
        trn, tin = tr[:, sl], ti[:, sl]

        # K_n = T_n @ Mw^T            (forward FFT, column pass)
        t1, t2, t3 = dot(trn, gwr), dot(tin, gwi), dot(trn + tin, gws)
        kr, ki = t1 - t2, t3 - t1 - t2

        # data consistency: (1 - mask) * K + xk_under  (mask broadcast to R/I)
        om = 1.0 - m[:, sl]
        kr = om * kr + xkr[:, sl]
        ki = om * ki + xki[:, sl]

        # U_n = K'_n @ conj(Mw^T)     (inverse FFT, column pass)
        t1, t2, t3 = dot(kr, gwr), dot(ki, gwi), dot(kr + ki, gwd)
        u_scr[0, :, sl] = t1 + t2
        u_scr[1, :, sl] = t3 - t1 + t2

    # ---- inverse row pass, widened:  Y = conj(Fh) @ U ------------------------
    ur, ui = u_scr[0], u_scr[1]
    t1, t2, t3 = dot(fhr, ur), dot(fhi, ui), dot(fhd, ur + ui)
    out_ref[0] = (t1 + t2).astype(out_ref.dtype)
    out_ref[1] = (t3 - t1 + t2).astype(out_ref.dtype)


def _pick_batch_block(n, w):
    """Images per grid step: aim for lane width >= 256 (fills the MXU, dense
    stores) while keeping >1 grid step when possible (v7x megacore)."""
    nb = min(n, max(1, 256 // w))
    while n % nb:
        nb -= 1
    if (nb * w) % 128 != 0:
        # Block must span the full lane extent if it is not 128-aligned.
        nb = n
    return nb


# ----------------------------------------------------------------------------
# DC_layer wrapper (parameter/DFT-matrix setup + pallas_call plumbing).
# ----------------------------------------------------------------------------
def dc_layer(mask, x_rec, xk_under, *, batch_block=None):
    N, C, H, W = x_rec.shape
    assert C == 2
    assert mask.shape == (N, 1, H, W)
    assert xk_under.shape == x_rec.shape
    f32 = jnp.float32

    # Forward DFT matrices only; the inverse path uses their conjugates.
    fh = _centered_dft_mat(H)          # acts on rows   (H axis)
    gw = _centered_dft_mat(W).T        # Mw^T, right operand for columns
    fh_stack = jnp.stack([fh.real, fh.imag]).astype(f32)   # (2, H, H)
    gw_stack = jnp.stack([gw.real, gw.imag]).astype(f32)   # (2, W, W)

    nb = batch_block if batch_block is not None else _pick_batch_block(N, W)
    assert N % nb == 0
    assert (nb * W) % 128 == 0 or nb == N
    g = N // nb
    nbw = nb * W

    # Fold batch into the lane (last) axis: (N,2,H,W) -> (2,H,N*W).
    x2 = jnp.transpose(x_rec.astype(f32), (1, 2, 0, 3)).reshape(2, H, N * W)
    xk2 = jnp.transpose(xk_under.astype(f32), (1, 2, 0, 3)).reshape(2, H, N * W)
    m2 = jnp.transpose(mask.astype(f32)[:, 0], (1, 0, 2)).reshape(H, N * W)

    # Raise the scoped VMEM limit only when the resident working set needs it.
    bpe = 4
    data_blocks = 7 * H * nbw * bpe            # mask + x(2) + xk(2) + out(2)
    const_mats = 2 * (H * H + W * W) * bpe     # stacked Fh and Mw^T
    scratch = 2 * H * nbw * bpe
    interm = (12 * H * nbw + 4 * H * H + 4 * W * W) * bpe
    est = 2 * (data_blocks + const_mats) + scratch + interm   # x2 = double buffers
    vmem_limit = min(int(est), 96 << 20) if est > (16 << 20) else None

    out2 = pl.pallas_call(
        _dc_kernel,
        out_shape=jax.ShapeDtypeStruct((2, H, N * W), f32),
        grid=(g,),
        in_specs=[
            pl.BlockSpec((H, nbw), lambda i: (0, i)),          # mask
            pl.BlockSpec((2, H, nbw), lambda i: (0, 0, i)),    # x_rec
            pl.BlockSpec((2, H, nbw), lambda i: (0, 0, i)),    # xk_under
            pl.BlockSpec((2, H, H), lambda i: (0, 0, 0)),      # Fh  [real, imag]
            pl.BlockSpec((2, W, W), lambda i: (0, 0, 0)),      # Mw^T [real, imag]
        ],
        out_specs=pl.BlockSpec((2, H, nbw), lambda i: (0, 0, i)),
        scratch_shapes=[pltpu.VMEM((2, H, nbw), f32)],
        compiler_params=pltpu.CompilerParams(
            dimension_semantics=("parallel",),
            vmem_limit_bytes=vmem_limit,
        ),
    )(m2, x2, xk2, fh_stack, gw_stack)

    # (2,H,N*W) -> (N,2,H,W)
    return jnp.transpose(out2.reshape(2, H, N, W), (2, 0, 1, 3))


# ----------------------------------------------------------------------------
# MICCANlong.forward
# ----------------------------------------------------------------------------
def miccan_long_forward(x_under, xk_under, mask, rec=True):
    if rec:
        # TODO(synk): the `unet(in_channel, out_channel)` body is not provided in
        # the source; only DC_layer is. The data-consistency hot path
        # (fft2c -> k-space masked merge -> ifft2c) is implemented in Pallas here.
        return dc_layer(mask, x_under, xk_under)
    else:
        # TODO(synk): `unet1` definition not provided in source; passthrough.
        return x_under


# ----------------------------------------------------------------------------
# Pure-JAX reference for the DC layer (for correctness check).
# ----------------------------------------------------------------------------
def _dc_reference(mask, x_rec, xk_under):
    def fft2c(x):
        return jnp.fft.fftshift(
            jnp.fft.fft2(jnp.fft.ifftshift(x, axes=(-2, -1)), norm="ortho"),
            axes=(-2, -1))

    def ifft2c(x):
        return jnp.fft.fftshift(
            jnp.fft.ifft2(jnp.fft.ifftshift(x, axes=(-2, -1)), norm="ortho"),
            axes=(-2, -1))

    xc = x_rec[:, 0] + 1j * x_rec[:, 1]
    xf = fft2c(xc)
    xf_r = jnp.stack([xf.real, xf.imag], axis=1)
    masks = jnp.concatenate([mask, mask], axis=1)
    outk = (1.0 - masks) * xf_r + xk_under
    oc = ifft2c(outk[:, 0] + 1j * outk[:, 1])
    return jnp.stack([oc.real, oc.imag], axis=1)


if __name__ == "__main__":
    key = jax.random.PRNGKey(0)
    k1, k2, k3 = jax.random.split(key, 3)

    N, H, W = 2, 16, 16
    x_under = jax.random.normal(k1, (N, 2, H, W), jnp.float32)
    xk_under = jax.random.normal(k2, (N, 2, H, W), jnp.float32)
    mask = jax.random.bernoulli(k3, 0.4, (N, 1, H, W)).astype(jnp.float32)

    out = miccan_long_forward(x_under, xk_under, mask, rec=True)
    out = jax.block_until_ready(out)

    ref = _dc_reference(mask, x_under, xk_under)
    max_err = float(jnp.max(jnp.abs(out - ref)))
    assert jnp.allclose(out, ref, atol=1e-4, rtol=1e-4), f"max_err={max_err}"

    print("KERNEL_OK")
</pallas_src>

<mosaic_0001>
module attributes {stable_mosaic.version = 11 : i64} {
  func.func @_dc_kernel(%arg0: i32, %arg1: memref<16x32xf32, #tpu.memory_space<vmem>>, %arg2: memref<2x16x32xf32, #tpu.memory_space<vmem>>, %arg3: memref<2x16x32xf32, #tpu.memory_space<vmem>>, %arg4: memref<2x16x16xf32, #tpu.memory_space<vmem>>, %arg5: memref<2x16x16xf32, #tpu.memory_space<vmem>>, %arg6: memref<2x16x32xf32, #tpu.memory_space<vmem>>, %arg7: memref<2x16x32xf32, #tpu.memory_space<vmem>>) attributes {dimension_semantics = [#tpu.dimension_semantics<parallel>], iteration_bounds = array<i64: 1>, scalar_prefetch = 0 : i64, scratch_operands = 1 : i64, tpu.core_type = #tpu.core_type<tc>, window_params = [{transform_indices = @transform_0, window_bounds = array<i64: 16, 32>}, {transform_indices = @transform_1, window_bounds = array<i64: 2, 16, 32>}, {transform_indices = @transform_2, window_bounds = array<i64: 2, 16, 32>}, {pipeline_mode = #tpu.pipeline_mode<synchronous>, transform_indices = @transform_3, window_bounds = array<i64: 2, 16, 16>}, {pipeline_mode = #tpu.pipeline_mode<synchronous>, transform_indices = @transform_4, window_bounds = array<i64: 2, 16, 16>}, {transform_indices = @transform_5, window_bounds = array<i64: 2, 16, 32>}]} {
    %c0 = arith.constant 0 : index
    %c0_0 = arith.constant 0 : index
    %c0_1 = arith.constant 0 : index
    %0 = vector.load %arg4[%c0, %c0_0, %c0_1] : memref<2x16x16xf32, #tpu.memory_space<vmem>>, vector<1x16x16xf32>
    %1 = vector.shape_cast %0 : vector<1x16x16xf32> to vector<16x16xf32>
    %c1 = arith.constant 1 : index
    %c0_2 = arith.constant 0 : index
    %c0_3 = arith.constant 0 : index
    %2 = vector.load %arg4[%c1, %c0_2, %c0_3] : memref<2x16x16xf32, #tpu.memory_space<vmem>>, vector<1x16x16xf32>
    %3 = vector.shape_cast %2 : vector<1x16x16xf32> to vector<16x16xf32>
    %c0_4 = arith.constant 0 : index
    %c0_5 = arith.constant 0 : index
    %c0_6 = arith.constant 0 : index
    %4 = vector.load %arg5[%c0_4, %c0_5, %c0_6] : memref<2x16x16xf32, #tpu.memory_space<vmem>>, vector<1x16x16xf32>
    %5 = vector.shape_cast %4 : vector<1x16x16xf32> to vector<16x16xf32>
    %c1_7 = arith.constant 1 : index
    %c0_8 = arith.constant 0 : index
    %c0_9 = arith.constant 0 : index
    %6 = vector.load %arg5[%c1_7, %c0_8, %c0_9] : memref<2x16x16xf32, #tpu.memory_space<vmem>>, vector<1x16x16xf32>
    %7 = vector.shape_cast %6 : vector<1x16x16xf32> to vector<16x16xf32>
    %8 = arith.addf %1, %3 : vector<16x16xf32>
    %9 = arith.subf %1, %3 : vector<16x16xf32>
    %10 = arith.addf %5, %7 : vector<16x16xf32>
    %11 = arith.subf %5, %7 : vector<16x16xf32>
    %c0_10 = arith.constant 0 : index
    %c0_11 = arith.constant 0 : index
    %c0_12 = arith.constant 0 : index
    %12 = vector.load %arg2[%c0_10, %c0_11, %c0_12] : memref<2x16x32xf32, #tpu.memory_space<vmem>>, vector<1x16x32xf32>
    %13 = vector.shape_cast %12 : vector<1x16x32xf32> to vector<16x32xf32>
    %c1_13 = arith.constant 1 : index
    %c0_14 = arith.constant 0 : index
    %c0_15 = arith.constant 0 : index
    %14 = vector.load %arg2[%c1_13, %c0_14, %c0_15] : memref<2x16x32xf32, #tpu.memory_space<vmem>>, vector<1x16x32xf32>
    %15 = vector.shape_cast %14 : vector<1x16x32xf32> to vector<16x32xf32>
    %cst = arith.constant dense<0.000000e+00> : vector<16x32xf32>
    %16 = tpu.matmul %1, %13, %cst {dimension_numbers = #tpu.dot_dimension_numbers<[1], [0], [0], [1], [0, 0, 1, 1], [], []>} : vector<16x16xf32>, vector<16x32xf32>, vector<16x32xf32> -> vector<16x32xf32>
    %cst_16 = arith.constant dense<0.000000e+00> : vector<16x32xf32>
    %17 = tpu.matmul %3, %15, %cst_16 {dimension_numbers = #tpu.dot_dimension_numbers<[1], [0], [0], [1], [0, 0, 1, 1], [], []>} : vector<16x16xf32>, vector<16x32xf32>, vector<16x32xf32> -> vector<16x32xf32>
    %18 = arith.addf %13, %15 : vector<16x32xf32>
    %cst_17 = arith.constant dense<0.000000e+00> : vector<16x32xf32>
    %19 = tpu.matmul %8, %18, %cst_17 {dimension_numbers = #tpu.dot_dimension_numbers<[1], [0], [0], [1], [0, 0, 1, 1], [], []>} : vector<16x16xf32>, vector<16x32xf32>, vector<16x32xf32> -> vector<16x32xf32>
    %20 = arith.subf %16, %17 : vector<16x32xf32>
    %21 = arith.subf %19, %16 : vector<16x32xf32>
    %22 = arith.subf %21, %17 : vector<16x32xf32>
    %c0_18 = arith.constant 0 : index
    %c0_19 = arith.constant 0 : index
    %23 = vector.load %arg1[%c0_18, %c0_19] : memref<16x32xf32, #tpu.memory_space<vmem>>, vector<16x32xf32>
    %c0_20 = arith.constant 0 : index
    %c0_21 = arith.constant 0 : index
    %c0_22 = arith.constant 0 : index
    %24 = vector.load %arg3[%c0_20, %c0_21, %c0_22] : memref<2x16x32xf32, #tpu.memory_space<vmem>>, vector<1x16x32xf32>
    %25 = vector.shape_cast %24 : vector<1x16x32xf32> to vector<16x32xf32>
    %c1_23 = arith.constant 1 : index
    %c0_24 = arith.constant 0 : index
    %c0_25 = arith.constant 0 : index
    %26 = vector.load %arg3[%c1_23, %c0_24, %c0_25] : memref<2x16x32xf32, #tpu.memory_space<vmem>>, vector<1x16x32xf32>
    %27 = vector.shape_cast %26 : vector<1x16x32xf32> to vector<16x32xf32>
    %28 = vector.extract_strided_slice %20 {offsets = [0, 0], sizes = [16, 16], strides = [1, 1]} : vector<16x32xf32> to vector<16x16xf32>
    %29 = vector.extract_strided_slice %22 {offsets = [0, 0], sizes = [16, 16], strides = [1, 1]} : vector<16x32xf32> to vector<16x16xf32>
    %cst_26 = arith.constant dense<0.000000e+00> : vector<16x16xf32>
    %30 = tpu.matmul %28, %5, %cst_26 {dimension_numbers = #tpu.dot_dimension_numbers<[1], [0], [0], [1], [0, 0, 1, 1], [], []>} : vector<16x16xf32>, vector<16x16xf32>, vector<16x16xf32> -> vector<16x16xf32>
    %cst_27 = arith.constant dense<0.000000e+00> : vector<16x16xf32>
    %31 = tpu.matmul %29, %7, %cst_27 {dimension_numbers = #tpu.dot_dimension_numbers<[1], [0], [0], [1], [0, 0, 1, 1], [], []>} : vector<16x16xf32>, vector<16x16xf32>, vector<16x16xf32> -> vector<16x16xf32>
    %32 = arith.addf %28, %29 : vector<16x16xf32>
    %cst_28 = arith.constant dense<0.000000e+00> : vector<16x16xf32>
    %33 = tpu.matmul %32, %10, %cst_28 {dimension_numbers = #tpu.dot_dimension_numbers<[1], [0], [0], [1], [0, 0, 1, 1], [], []>} : vector<16x16xf32>, vector<16x16xf32>, vector<16x16xf32> -> vector<16x16xf32>
    %34 = arith.subf %30, %31 : vector<16x16xf32>
    %35 = arith.subf %33, %30 : vector<16x16xf32>
    %36 = arith.subf %35, %31 : vector<16x16xf32>
    %37 = vector.extract_strided_slice %23 {offsets = [0, 0], sizes = [16, 16], strides = [1, 1]} : vector<16x32xf32> to vector<16x16xf32>
    %cst_29 = arith.constant 1.000000e+00 : f32
    %38 = vector.broadcast %cst_29 : f32 to vector<16x16xf32>
    %39 = arith.subf %38, %37 : vector<16x16xf32>
    %40 = arith.mulf %39, %34 : vector<16x16xf32>
    %41 = vector.extract_strided_slice %25 {offsets = [0, 0], sizes = [16, 16], strides = [1, 1]} : vector<16x32xf32> to vector<16x16xf32>
    %42 = arith.addf %40, %41 : vector<16x16xf32>
    %43 = arith.mulf %39, %36 : vector<16x16xf32>
    %44 = vector.extract_strided_slice %27 {offsets = [0, 0], sizes = [16, 16], strides = [1, 1]} : vector<16x32xf32> to vector<16x16xf32>
    %45 = arith.addf %43, %44 : vector<16x16xf32>
    %cst_30 = arith.constant dense<0.000000e+00> : vector<16x16xf32>
    %46 = tpu.matmul %42, %5, %cst_30 {dimension_numbers = #tpu.dot_dimension_numbers<[1], [0], [0], [1], [0, 0, 1, 1], [], []>} : vector<16x16xf32>, vector<16x16xf32>, vector<16x16xf32> -> vector<16x16xf32>
    %cst_31 = arith.constant dense<0.000000e+00> : vector<16x16xf32>
    %47 = tpu.matmul %45, %7, %cst_31 {dimension_numbers = #tpu.dot_dimension_numbers<[1], [0], [0], [1], [0, 0, 1, 1], [], []>} : vector<16x16xf32>, vector<16x16xf32>, vector<16x16xf32> -> vector<16x16xf32>
    %48 = arith.addf %42, %45 : vector<16x16xf32>
    %cst_32 = arith.constant dense<0.000000e+00> : vector<16x16xf32>
    %49 = tpu.matmul %48, %11, %cst_32 {dimension_numbers = #tpu.dot_dimension_numbers<[1], [0], [0], [1], [0, 0, 1, 1], [], []>} : vector<16x16xf32>, vector<16x16xf32>, vector<16x16xf32> -> vector<16x16xf32>
    %50 = arith.addf %46, %47 : vector<16x16xf32>
    %c0_33 = arith.constant 0 : index
    %c0_34 = arith.constant 0 : index
    %c0_35 = arith.constant 0 : index
    %51 = vector.load %arg7[%c0_33, %c0_34, %c0_35] : memref<2x16x32xf32, #tpu.memory_space<vmem>>, vector<1x16x16xf32>
    %52 = vector.shape_cast %51 : vector<1x16x16xf32> to vector<16x16xf32>
    %53 = vector.shape_cast %50 : vector<16x16xf32> to vector<1x16x16xf32>
    tpu.vector_store %arg7[%c0_33, %c0_34, %c0_35], %53 {strides = array<i32>} : memref<2x16x32xf32, #tpu.memory_space<vmem>>, vector<1x16x16xf32>,
    %54 = arith.subf %49, %46 : vector<16x16xf32>
    %55 = arith.addf %54, %47 : vector<16x16xf32>
    %c1_36 = arith.constant 1 : index
    %c0_37 = arith.constant 0 : index
    %c0_38 = arith.constant 0 : index
    %56 = vector.load %arg7[%c1_36, %c0_37, %c0_38] : memref<2x16x32xf32, #tpu.memory_space<vmem>>, vector<1x16x16xf32>
    %57 = vector.shape_cast %56 : vector<1x16x16xf32> to vector<16x16xf32>
    %58 = vector.shape_cast %55 : vector<16x16xf32> to vector<1x16x16xf32>
    tpu.vector_store %arg7[%c1_36, %c0_37, %c0_38], %58 {strides = array<i32>} : memref<2x16x32xf32, #tpu.memory_space<vmem>>, vector<1x16x16xf32>,
    %59 = vector.extract_strided_slice %20 {offsets = [0, 16], sizes = [16, 16], strides = [1, 1]} : vector<16x32xf32> to vector<16x16xf32>
    %60 = vector.extract_strided_slice %22 {offsets = [0, 16], sizes = [16, 16], strides = [1, 1]} : vector<16x32xf32> to vector<16x16xf32>
    %cst_39 = arith.constant dense<0.000000e+00> : vector<16x16xf32>
    %61 = tpu.matmul %59, %5, %cst_39 {dimension_numbers = #tpu.dot_dimension_numbers<[1], [0], [0], [1], [0, 0, 1, 1], [], []>} : vector<16x16xf32>, vector<16x16xf32>, vector<16x16xf32> -> vector<16x16xf32>
    %cst_40 = arith.constant dense<0.000000e+00> : vector<16x16xf32>
    %62 = tpu.matmul %60, %7, %cst_40 {dimension_numbers = #tpu.dot_dimension_numbers<[1], [0], [0], [1], [0, 0, 1, 1], [], []>} : vector<16x16xf32>, vector<16x16xf32>, vector<16x16xf32> -> vector<16x16xf32>
    %63 = arith.addf %59, %60 : vector<16x16xf32>
    %cst_41 = arith.constant dense<0.000000e+00> : vector<16x16xf32>
    %64 = tpu.matmul %63, %10, %cst_41 {dimension_numbers = #tpu.dot_dimension_numbers<[1], [0], [0], [1], [0, 0, 1, 1], [], []>} : vector<16x16xf32>, vector<16x16xf32>, vector<16x16xf32> -> vector<16x16xf32>
    %65 = arith.subf %61, %62 : vector<16x16xf32>
    %66 = arith.subf %64, %61 : vector<16x16xf32>
    %67 = arith.subf %66, %62 : vector<16x16xf32>
    %68 = vector.extract_strided_slice %23 {offsets = [0, 16], sizes = [16, 16], strides = [1, 1]} : vector<16x32xf32> to vector<16x16xf32>
    %cst_42 = arith.constant 1.000000e+00 : f32
    %69 = vector.broadcast %cst_42 : f32 to vector<16x16xf32>
    %70 = arith.subf %69, %68 : vector<16x16xf32>
    %71 = arith.mulf %70, %65 : vector<16x16xf32>
    %72 = vector.extract_strided_slice %25 {offsets = [0, 16], sizes = [16, 16], strides = [1, 1]} : vector<16x32xf32> to vector<16x16xf32>
    %73 = arith.addf %71, %72 : vector<16x16xf32>
    %74 = arith.mulf %70, %67 : vector<16x16xf32>
    %75 = vector.extract_strided_slice %27 {offsets = [0, 16], sizes = [16, 16], strides = [1, 1]} : vector<16x32xf32> to vector<16x16xf32>
    %76 = arith.addf %74, %75 : vector<16x16xf32>
    %cst_43 = arith.constant dense<0.000000e+00> : vector<16x16xf32>
    %77 = tpu.matmul %73, %5, %cst_43 {dimension_numbers = #tpu.dot_dimension_numbers<[1], [0], [0], [1], [0, 0, 1, 1], [], []>} : vector<16x16xf32>, vector<16x16xf32>, vector<16x16xf32> -> vector<16x16xf32>
    %cst_44 = arith.constant dense<0.000000e+00> : vector<16x16xf32>
    %78 = tpu.matmul %76, %7, %cst_44 {dimension_numbers = #tpu.dot_dimension_numbers<[1], [0], [0], [1], [0, 0, 1, 1], [], []>} : vector<16x16xf32>, vector<16x16xf32>, vector<16x16xf32> -> vector<16x16xf32>
    %79 = arith.addf %73, %76 : vector<16x16xf32>
    %cst_45 = arith.constant dense<0.000000e+00> : vector<16x16xf32>
    %80 = tpu.matmul %79, %11, %cst_45 {dimension_numbers = #tpu.dot_dimension_numbers<[1], [0], [0], [1], [0, 0, 1, 1], [], []>} : vector<16x16xf32>, vector<16x16xf32>, vector<16x16xf32> -> vector<16x16xf32>
    %81 = arith.addf %77, %78 : vector<16x16xf32>
    %c0_46 = arith.constant 0 : index
    %c0_47 = arith.constant 0 : index
    %c16 = arith.constant 16 : index
    %82 = vector.load %arg7[%c0_46, %c0_47, %c16] : memref<2x16x32xf32, #tpu.memory_space<vmem>>, vector<1x16x16xf32>
    %83 = vector.shape_cast %82 : vector<1x16x16xf32> to vector<16x16xf32>
    %84 = vector.shape_cast %81 : vector<16x16xf32> to vector<1x16x16xf32>
    tpu.vector_store %arg7[%c0_46, %c0_47, %c16], %84 {strides = array<i32>} : memref<2x16x32xf32, #tpu.memory_space<vmem>>, vector<1x16x16xf32>,
    %85 = arith.subf %80, %77 : vector<16x16xf32>
    %86 = arith.addf %85, %78 : vector<16x16xf32>
    %c1_48 = arith.constant 1 : index
    %c0_49 = arith.constant 0 : index
    %c16_50 = arith.constant 16 : index
    %87 = vector.load %arg7[%c1_48, %c0_49, %c16_50] : memref<2x16x32xf32, #tpu.memory_space<vmem>>, vector<1x16x16xf32>
    %88 = vector.shape_cast %87 : vector<1x16x16xf32> to vector<16x16xf32>
    %89 = vector.shape_cast %86 : vector<16x16xf32> to vector<1x16x16xf32>
    tpu.vector_store %arg7[%c1_48, %c0_49, %c16_50], %89 {strides = array<i32>} : memref<2x16x32xf32, #tpu.memory_space<vmem>>, vector<1x16x16xf32>,
    %c0_51 = arith.constant 0 : index
    %c0_52 = arith.constant 0 : index
    %c0_53 = arith.constant 0 : index
    %90 = vector.load %arg7[%c0_51, %c0_52, %c0_53] : memref<2x16x32xf32, #tpu.memory_space<vmem>>, vector<1x16x32xf32>
    %91 = vector.shape_cast %90 : vector<1x16x32xf32> to vector<16x32xf32>
    %c1_54 = arith.constant 1 : index
    %c0_55 = arith.constant 0 : index
    %c0_56 = arith.constant 0 : index
    %92 = vector.load %arg7[%c1_54, %c0_55, %c0_56] : memref<2x16x32xf32, #tpu.memory_space<vmem>>, vector<1x16x32xf32>
    %93 = vector.shape_cast %92 : vector<1x16x32xf32> to vector<16x32xf32>
    %cst_57 = arith.constant dense<0.000000e+00> : vector<16x32xf32>
    %94 = tpu.matmul %1, %91, %cst_57 {dimension_numbers = #tpu.dot_dimension_numbers<[1], [0], [0], [1], [0, 0, 1, 1], [], []>} : vector<16x16xf32>, vector<16x32xf32>, vector<16x32xf32> -> vector<16x32xf32>
    %cst_58 = arith.constant dense<0.000000e+00> : vector<16x32xf32>
    %95 = tpu.matmul %3, %93, %cst_58 {dimension_numbers = #tpu.dot_dimension_numbers<[1], [0], [0], [1], [0, 0, 1, 1], [], []>} : vector<16x16xf32>, vector<16x32xf32>, vector<16x32xf32> -> vector<16x32xf32>
    %96 = arith.addf %91, %93 : vector<16x32xf32>
    %cst_59 = arith.constant dense<0.000000e+00> : vector<16x32xf32>
    %97 = tpu.matmul %9, %96, %cst_59 {dimension_numbers = #tpu.dot_dimension_numbers<[1], [0], [0], [1], [0, 0, 1, 1], [], []>} : vector<16x16xf32>, vector<16x32xf32>, vector<16x32xf32> -> vector<16x32xf32>
    %98 = arith.addf %94, %95 : vector<16x32xf32>
    %c0_60 = arith.constant 0 : index
    %c0_61 = arith.constant 0 : index
    %c0_62 = arith.constant 0 : index
    %99 = vector.load %arg6[%c0_60, %c0_61, %c0_62] : memref<2x16x32xf32, #tpu.memory_space<vmem>>, vector<1x16x32xf32>
    %100 = vector.shape_cast %99 : vector<1x16x32xf32> to vector<16x32xf32>
    %101 = vector.shape_cast %98 : vector<16x32xf32> to vector<1x16x32xf32>
    tpu.vector_store %arg6[%c0_60, %c0_61, %c0_62], %101 {strides = array<i32>} : memref<2x16x32xf32, #tpu.memory_space<vmem>>, vector<1x16x32xf32>,
    %102 = arith.subf %97, %94 : vector<16x32xf32>
    %103 = arith.addf %102, %95 : vector<16x32xf32>
    %c1_63 = arith.constant 1 : index
    %c0_64 = arith.constant 0 : index
    %c0_65 = arith.constant 0 : index
    %104 = vector.load %arg6[%c1_63, %c0_64, %c0_65] : memref<2x16x32xf32, #tpu.memory_space<vmem>>, vector<1x16x32xf32>
    %105 = vector.shape_cast %104 : vector<1x16x32xf32> to vector<16x32xf32>
    %106 = vector.shape_cast %103 : vector<16x32xf32> to vector<1x16x32xf32>
    tpu.vector_store %arg6[%c1_63, %c0_64, %c0_65], %106 {strides = array<i32>} : memref<2x16x32xf32, #tpu.memory_space<vmem>>, vector<1x16x32xf32>,
    return
  }
  func.func @transform_0(%arg0: i32) -> (i32, i32) {
    %c0_i32 = arith.constant 0 : i32
    %c0_i32_0 = arith.constant 0 : i32
    return %c0_i32, %arg0 : i32, i32
  }
  func.func @transform_1(%arg0: i32) -> (i32, i32, i32) {
    %c0_i32 = arith.constant 0 : i32
    %c0_i32_0 = arith.constant 0 : i32
    %c0_i32_1 = arith.constant 0 : i32
    return %c0_i32, %c0_i32_0, %arg0 : i32, i32, i32
  }
  func.func @transform_2(%arg0: i32) -> (i32, i32, i32) {
    %c0_i32 = arith.constant 0 : i32
    %c0_i32_0 = arith.constant 0 : i32
    %c0_i32_1 = arith.constant 0 : i32
    return %c0_i32, %c0_i32_0, %arg0 : i32, i32, i32
  }
  func.func @transform_3(%arg0: i32) -> (i32, i32, i32) {
    %c0_i32 = arith.constant 0 : i32
    %c0_i32_0 = arith.constant 0 : i32
    %c0_i32_1 = arith.constant 0 : i32
    %c0_i32_2 = arith.constant 0 : i32
    return %c0_i32, %c0_i32_0, %c0_i32_1 : i32, i32, i32
  }
  func.func @transform_4(%arg0: i32) -> (i32, i32, i32) {
    %c0_i32 = arith.constant 0 : i32
    %c0_i32_0 = arith.constant 0 : i32
    %c0_i32_1 = arith.constant 0 : i32
    %c0_i32_2 = arith.constant 0 : i32
    return %c0_i32, %c0_i32_0, %c0_i32_1 : i32, i32, i32
  }
  func.func @transform_5(%arg0: i32) -> (i32, i32, i32) {
    %c0_i32 = arith.constant 0 : i32
    %c0_i32_0 = arith.constant 0 : i32
    %c0_i32_1 = arith.constant 0 : i32
    return %c0_i32, %c0_i32_0, %arg0 : i32, i32, i32
  }
}

</mosaic_0001>

<llo_original>
// kernel: tpu_custom_call.1
$region0: #{tpu_custom_call.1}
  #allocation0 [shape = 'u32[]', space=smem, size = 0x4, offset = 0x4, fixed_abs, tag = 'smem constant byte address 0x4 - core index']
  #allocation1 [shape = 'u32[144,128]{1,0:T(1,128)}', space=vmem, size = 0x12000, scoped, tag = 'internal scratch']
  #allocation2 [shape = 'f32[2,16,32]{2,1,0:T(8,128)}', space=vmem, size = 0x4000, scoped, tag = 'scratch operand']
  %s0 = inlined_call_operand.hbm [shape: f32[16,32], index: 0, kind: input, shape index: {}]
  %s1 = inlined_call_operand.hbm [shape: f32[2,16,32], index: 1, kind: input, shape index: {}]
  %s2 = inlined_call_operand.hbm [shape: f32[2,16,32], index: 2, kind: input, shape index: {}]
  %s3 = inlined_call_operand.hbm [shape: f32[2,16,16], index: 3, kind: input, shape index: {}]
  %s4 = inlined_call_operand.hbm [shape: f32[2,16,16], index: 4, kind: input, shape index: {}]
  %s5 = inlined_call_operand.hbm [shape: f32[2,16,32], index: 5, kind: output, shape index: {}]
  %s6 = sld [smem:[#allocation0]]
  $region50: #{tpu_custom_call.1} parent=0
    _
  %s8 = ssub.s32 1, %s6
  %s9 = scalar_select 0, %s8, %s6
  $region1: #{tpu_custom_call.1} parent=0
    #allocation3 [shape = 'u8[8192]{0}', space=vmem, size = 0x2000, scoped, tag = 'input window, operand 0, single buffered']
    #allocation4 [shape = 's32[1]{0}', space=sflag, size = 0x4, scoped, tag = 'scoped memory for tpu_custom_call.1']
    #allocation5 [shape = 's32[1]{0}', space=sflag, size = 0x4, scoped, tag = 'scoped memory for tpu_custom_call.1']
    #allocation6 [shape = 'u8[16384]{0}', space=vmem, size = 0x4000, scoped, tag = 'input window, operand 1, single buffered']
    #allocation7 [shape = 's32[1]{0}', space=sflag, size = 0x4, scoped, tag = 'scoped memory for tpu_custom_call.1']
    #allocation8 [shape = 'u8[16384]{0}', space=vmem, size = 0x4000, scoped, tag = 'input window, operand 2, single buffered']
    #allocation9 [shape = 'u8[16384]{0}', space=vmem, size = 0x4000, scoped, tag = 'input window, operand 3, single buffered']
    #allocation10 [shape = 's32[1]{0}', space=sflag, size = 0x4, scoped, tag = 'scoped memory for tpu_custom_call.1']
    #allocation11 [shape = 'u8[16384]{0}', space=vmem, size = 0x4000, scoped, tag = 'input window, operand 4, single buffered']
    #allocation12 [shape = 'u8[16384]{0}', space=vmem, size = 0x4000, scoped, tag = 'output window, operand 0, single buffered']
    %10 = vsyncpa [#allocation4], 0
    %11 = vsyncpa [#allocation7], 0
    %12 = vsyncpa [#allocation10], 0
    %13 = vsyncpa [#allocation5], 0
    // Predicated region
    $region2: #{tpu_custom_call.1} parent=1 // pred_check
      _
    $region3: #{tpu_custom_call.1} parent=1 // pred_check_branch
      %15 = sbr.rel (0) target = $region5
    $region4: #{tpu_custom_call.1} parent=1 // pred_region
      %s17 = ssub.s32 256, 256
      %18 = vsyncadd [#allocation4], %s17
      %s19 = sshll.u32 [#allocation3], 4
      %s20 = int_to_ptr.vmem [resolvable:$true] %s19
      %25 = dma.hbm_to_vmem [thread:$0]  %s0, 256, %s20, [#allocation4], 128, 128, 8
    $region5: #{tpu_custom_call.1} parent=1 // pred_fallthru
      _
    // Predicated region
    $region6: #{tpu_custom_call.1} parent=1 // pred_check
      _
    $region7: #{tpu_custom_call.1} parent=1 // pred_check_branch
      %27 = sbr.rel (0) target = $region9
    $region8: #{tpu_custom_call.1} parent=1 // pred_region
      %s29 = ssub.s32 512, 512
      %30 = vsyncadd [#allocation7], %s29
      %s31 = sshll.u32 [#allocation6], 4
      %s32 = int_to_ptr.vmem [resolvable:$true] %s31
      %37 = dma.hbm_to_vmem [thread:$0]  %s1, 512, %s32, [#allocation7], 128, 128, 8
    $region9: #{tpu_custom_call.1} parent=1 // pred_fallthru
      _
    // Predicated region
    $region10: #{tpu_custom_call.1} parent=1 // pred_check
      _
    $region11: #{tpu_custom_call.1} parent=1 // pred_check_branch
      %39 = sbr.rel (0) target = $region13
    $region12: #{tpu_custom_call.1} parent=1 // pred_region
      %s41 = ssub.s32 512, 512
      %42 = vsyncadd [#allocation7], %s41
      %s43 = sshll.u32 [#allocation8], 4
      %s44 = int_to_ptr.vmem [resolvable:$true] %s43
      %49 = dma.hbm_to_vmem [thread:$0]  %s2, 512, %s44, [#allocation7], 128, 128, 8
    $region13: #{tpu_custom_call.1} parent=1 // pred_fallthru
      _
    // Predicated region
    $region14: #{tpu_custom_call.1} parent=1 // pred_check
      _
    $region15: #{tpu_custom_call.1} parent=1 // pred_check_branch
      %51 = sbr.rel (0) target = $region17
    $region16: #{tpu_custom_call.1} parent=1 // pred_region
      %s53 = ssub.s32 512, 512
      %54 = vsyncadd [#allocation10], %s53
      %s55 = sshll.u32 [#allocation9], 4
      %s56 = int_to_ptr.vmem [resolvable:$true] %s55
      %61 = dma.hbm_to_vmem [thread:$0]  %s3, 512, %s56, [#allocation10], 128, 128, 8
    $region17: #{tpu_custom_call.1} parent=1 // pred_fallthru
      _
    // Predicated region
    $region18: #{tpu_custom_call.1} parent=1 // pred_check
      _
    $region19: #{tpu_custom_call.1} parent=1 // pred_check_branch
      %63 = sbr.rel (0) target = $region21
    $region20: #{tpu_custom_call.1} parent=1 // pred_region
      %s65 = ssub.s32 512, 512
      %66 = vsyncadd [#allocation10], %s65
      %s67 = sshll.u32 [#allocation11], 4
      %s68 = int_to_ptr.vmem [resolvable:$true] %s67
      %73 = dma.hbm_to_vmem [thread:$0]  %s4, 512, %s68, [#allocation10], 128, 128, 8
    $region21: #{tpu_custom_call.1} parent=1 // pred_fallthru
      _
    // Predicated region
    $region22: #{tpu_custom_call.1} parent=1 // pred_check
      _
    $region23: #{tpu_custom_call.1} parent=1 // pred_check_branch
      %75 = sbr.rel (0) target = $region25
    $region24: #{tpu_custom_call.1} parent=1 // pred_region
      %76 = dma.done [#allocation4], 256
    $region25: #{tpu_custom_call.1} parent=1 // pred_fallthru
      _
    // Predicated region
    $region26: #{tpu_custom_call.1} parent=1 // pred_check
      _
    $region27: #{tpu_custom_call.1} parent=1 // pred_check_branch
      %78 = sbr.rel (0) target = $region29
    $region28: #{tpu_custom_call.1} parent=1 // pred_region
      %79 = dma.done [#allocation7], 512
    $region29: #{tpu_custom_call.1} parent=1 // pred_fallthru
      _
    // Predicated region
    $region30: #{tpu_custom_call.1} parent=1 // pred_check
      _
    $region31: #{tpu_custom_call.1} parent=1 // pred_check_branch
      %81 = sbr.rel (0) target = $region33
    $region32: #{tpu_custom_call.1} parent=1 // pred_region
      %82 = dma.done [#allocation7], 512
    $region33: #{tpu_custom_call.1} parent=1 // pred_fallthru
      _
    // Predicated region
    $region34: #{tpu_custom_call.1} parent=1 // pred_check
      _
    $region35: #{tpu_custom_call.1} parent=1 // pred_check_branch
      %84 = sbr.rel (0) target = $region37
    $region36: #{tpu_custom_call.1} parent=1 // pred_region
      %85 = dma.done [#allocation10], 512
    $region37: #{tpu_custom_call.1} parent=1 // pred_fallthru
      _
    // Predicated region
    $region38: #{tpu_custom_call.1} parent=1 // pred_check
      _
    $region39: #{tpu_custom_call.1} parent=1 // pred_check_branch
      %87 = sbr.rel (0) target = $region41
    $region40: #{tpu_custom_call.1} parent=1 // pred_region
      %88 = dma.done [#allocation10], 512
    $region41: #{tpu_custom_call.1} parent=1 // pred_fallthru
      _
    %v89 = vld [vmem:[#allocation9] sm:$0xff]
    %v90 = vld [vmem:[#allocation9 + $0x8] sm:$0xff]
    %s91 = scalar_lea.vmem [#allocation9], 16
    %v92 = vld [vmem:[%s91] sm:$0xff]
    %v93 = vld [vmem:[%s91 + $0x8] sm:$0xff]
    %v94 = vld [vmem:[#allocation11] sm:$0xff]
    %v95 = vld [vmem:[#allocation11 + $0x8] sm:$0xff]
    %s96 = scalar_lea.vmem [#allocation11], 16
    %v97 = vld [vmem:[%s96] sm:$0xff]
    %v98 = vld [vmem:[%s96 + $0x8] sm:$0xff]
    %v99 = vadd.f32 %v89, %v92
    %v100 = vadd.f32 %v90, %v93
    %v101 = vsub.f32 %v89, %v92
    %v102 = vsub.f32 %v90, %v93
    %v103 = vadd.f32 %v94, %v97
    %v104 = vadd.f32 %v95, %v98
    %v105 = vsub.f32 %v94, %v97
    %v106 = vsub.f32 %v95, %v98
    %v107 = vld [vmem:[#allocation6] sm:$0xff]
    %v108 = vld [vmem:[#allocation6 + $0x8] sm:$0xff]
    %s109 = scalar_lea.vmem [#allocation6], 16
    %v110 = vld [vmem:[%s109] sm:$0xff]
    %v111 = vld [vmem:[%s109 + $0x8] sm:$0xff]
    %vm112 = vcmask 130048
    %v114 = vsel %vm112, %v89, 0
    %v117 = vsel %vm112, %v90, 0
    %119 = vmatprep.subr.mxu0 0.0
    %120 = vmatpush1.msra.mxu0 %v107
    %121 = vmatprep.subr.mxu0 0.0
    %122 = vmatpush1.msra.mxu0 %v108
    %123 = vmatprep.subr.mxu0 0.0
    %124 = vmatpush1.msra.mxu0 0.0
    %125 = vmatprep.subr.mxu0 0.0
    %126 = vmatpush1.msra.mxu0 0.0
    %127 = vmatprep.subr.mxu0 0.0
    %128 = vmatpush1.msra.mxu0 0.0
    %129 = vmatprep.subr.mxu0 0.0
    %130 = vmatpush1.msra.mxu0 0.0
    %131 = vmatprep.subr.mxu0 0.0
    %132 = vmatpush1.msra.mxu0 0.0
    %133 = vmatprep.subr.mxu0 0.0
    %134 = vmatpush1.msra.mxu0 0.0
    %135 = vmatprep.subr.mxu0 0.0
    %136 = vmatpush1.msra.mxu0 0.0
    %137 = vmatprep.subr.mxu0 0.0
    %138 = vmatpush1.msra.mxu0 0.0
    %139 = vmatprep.subr.mxu0 0.0
    %140 = vmatpush1.msra.mxu0 0.0
    %141 = vmatprep.subr.mxu0 0.0
    %142 = vmatpush1.msra.mxu0 0.0
    %143 = vmatprep.subr.mxu0 0.0
    %144 = vmatpush1.msra.mxu0 0.0
    %145 = vmatprep.subr.mxu0 0.0
    %146 = vmatpush1.msra.mxu0 0.0
    %147 = vmatprep.subr.mxu0 0.0
    %148 = vmatpush1.msra.mxu0 0.0
    %149 = vmatprep.subr.mxu0 0.0
    %150 = vmatpush1.msra.mxu0 0.0
    %151 = vmatprep.subr.mxu0 0.0
    %152 = vmatpush1.msra.mxu0 0.0
    %153 = vmatprep.subr.mxu0 0.0
    %154 = vmatpush1.msra.mxu0 0.0
    %155 = vmatprep.subr.mxu0 0.0
    %156 = vmatpush1.msra.mxu0 0.0
    %157 = vmatprep.subr.mxu0 0.0
    %158 = vmatpush1.msra.mxu0 0.0
    %159 = vmatprep.subr.mxu0 0.0
    %160 = vmatpush1.msra.mxu0 0.0
    %161 = vmatprep.subr.mxu0 0.0
    %162 = vmatpush1.msra.mxu0 0.0
    %163 = vmatprep.subr.mxu0 0.0
    %164 = vmatpush1.msra.mxu0 0.0
    %165 = vmatprep.subr.mxu0 0.0
    %166 = vmatpush1.msra.mxu0 0.0
    %167 = vmatprep.subr.mxu0 0.0
    %168 = vmatpush1.msra.mxu0 0.0
    %169 = vmatprep.subr.mxu0 0.0
    %170 = vmatpush1.msra.mxu0 0.0
    %171 = vmatprep.subr.mxu0 0.0
    %172 = vmatpush1.msra.mxu0 0.0
    %173 = vmatprep.subr.mxu0 0.0
    %174 = vmatpush1.msra.mxu0 0.0
    %175 = vmatprep.subr.mxu0 0.0
    %176 = vmatpush1.msra.mxu0 0.0
    %177 = vmatprep.subr.mxu0 0.0
    %178 = vmatpush1.msra.mxu0 0.0
    %179 = vmatprep.subr.mxu0 0.0
    %180 = vmatpush1.msra.mxu0 0.0
    %181 = vmatprep.subr.mxu0 0.0
    %182 = vmatpush1.msra.mxu0 0.0
    %183 = vmatprep.mubr.f32.mxu0 0.0
    %184 = vmatmul.mubr.f32.gmra.mrb[0].mxu0 %v114
    %v185 = vpop.f32.mrb[0].mxu0
    %v186 = vadd.f32 0.0, %v185
    %v187 = vpop.f32.mrb[0].mxu0
    %188 = vmatprep.mubr.f32.mxu0 0.0
    %189 = vmatmul.mubr.f32.gmra.mrb[0].mxu0 %v117
    %v190 = vpop.f32.mrb[0].mxu0
    %v191 = vadd.f32 0.0, %v190
    %v192 = vpop.f32.mrb[0].mxu0
    %193 = vdwg.mxu0
    %v195 = vsel %vm112, %v92, 0
    %v198 = vsel %vm112, %v93, 0
    %200 = vmatprep.subr.mxu0 0.0
    %201 = vmatpush1.msra.mxu0 %v110
    %202 = vmatprep.subr.mxu0 0.0
    %203 = vmatpush1.msra.mxu0 %v111
    %204 = vmatprep.subr.mxu0 0.0
    %205 = vmatpush1.msra.mxu0 0.0
    %206 = vmatprep.subr.mxu0 0.0
    %207 = vmatpush1.msra.mxu0 0.0
    %208 = vmatprep.subr.mxu0 0.0
    %209 = vmatpush1.msra.mxu0 0.0
    %210 = vmatprep.subr.mxu0 0.0
    %211 = vmatpush1.msra.mxu0 0.0
    %212 = vmatprep.subr.mxu0 0.0
    %213 = vmatpush1.msra.mxu0 0.0
    %214 = vmatprep.subr.mxu0 0.0
    %215 = vmatpush1.msra.mxu0 0.0
    %216 = vmatprep.subr.mxu0 0.0
    %217 = vmatpush1.msra.mxu0 0.0
    %218 = vmatprep.subr.mxu0 0.0
    %219 = vmatpush1.msra.mxu0 0.0
    %220 = vmatprep.subr.mxu0 0.0
    %221 = vmatpush1.msra.mxu0 0.0
    %222 = vmatprep.subr.mxu0 0.0
    %223 = vmatpush1.msra.mxu0 0.0
    %224 = vmatprep.subr.mxu0 0.0
    %225 = vmatpush1.msra.mxu0 0.0
    %226 = vmatprep.subr.mxu0 0.0
    %227 = vmatpush1.msra.mxu0 0.0
    %228 = vmatprep.subr.mxu0 0.0
    %229 = vmatpush1.msra.mxu0 0.0
    %230 = vmatprep.subr.mxu0 0.0
    %231 = vmatpush1.msra.mxu0 0.0
    %232 = vmatprep.subr.mxu0 0.0
    %233 = vmatpush1.msra.mxu0 0.0
    %234 = vmatprep.subr.mxu0 0.0
    %235 = vmatpush1.msra.mxu0 0.0
    %236 = vmatprep.subr.mxu0 0.0
    %237 = vmatpush1.msra.mxu0 0.0
    %238 = vmatprep.subr.mxu0 0.0
    %239 = vmatpush1.msra.mxu0 0.0
    %240 = vmatprep.subr.mxu0 0.0
    %241 = vmatpush1.msra.mxu0 0.0
    %242 = vmatprep.subr.mxu0 0.0
    %243 = vmatpush1.msra.mxu0 0.0
    %244 = vmatprep.subr.mxu0 0.0
    %245 = vmatpush1.msra.mxu0 0.0
    %246 = vmatprep.subr.mxu0 0.0
    %247 = vmatpush1.msra.mxu0 0.0
    %248 = vmatprep.subr.mxu0 0.0
    %249 = vmatpush1.msra.mxu0 0.0
    %250 = vmatprep.subr.mxu0 0.0
    %251 = vmatpush1.msra.mxu0 0.0
    %252 = vmatprep.subr.mxu0 0.0
    %253 = vmatpush1.msra.mxu0 0.0
    %254 = vmatprep.subr.mxu0 0.0
    %255 = vmatpush1.msra.mxu0 0.0
    %256 = vmatprep.subr.mxu0 0.0
    %257 = vmatpush1.msra.mxu0 0.0
    %258 = vmatprep.subr.mxu0 0.0
    %259 = vmatpush1.msra.mxu0 0.0
    %260 = vmatprep.subr.mxu0 0.0
    %261 = vmatpush1.msra.mxu0 0.0
    %262 = vmatprep.subr.mxu0 0.0
    %263 = vmatpush1.msra.mxu0 0.0
    %264 = vmatprep.mubr.f32.mxu0 0.0
    %265 = vmatmul.mubr.f32.gmra.mrb[0].mxu0 %v195
    %v266 = vpop.f32.mrb[0].mxu0
    %v267 = vadd.f32 0.0, %v266
    %v268 = vpop.f32.mrb[0].mxu0
    %269 = vmatprep.mubr.f32.mxu0 0.0
    %270 = vmatmul.mubr.f32.gmra.mrb[0].mxu0 %v198
    %v271 = vpop.f32.mrb[0].mxu0
    %v272 = vadd.f32 0.0, %v271
    %v273 = vpop.f32.mrb[0].mxu0
    %274 = vdwg.mxu0
    %v275 = vadd.f32 %v107, %v110
    %v276 = vadd.f32 %v108, %v111
    %v278 = vsel %vm112, %v99, 0
    %v281 = vsel %vm112, %v100, 0
    %283 = vmatprep.subr.mxu0 0.0
    %284 = vmatpush1.msra.mxu0 %v275
    %285 = vmatprep.subr.mxu0 0.0
    %286 = vmatpush1.msra.mxu0 %v276
    %287 = vmatprep.subr.mxu0 0.0
    %288 = vmatpush1.msra.mxu0 0.0
    %289 = vmatprep.subr.mxu0 0.0
    %290 = vmatpush1.msra.mxu0 0.0
    %291 = vmatprep.subr.mxu0 0.0
    %292 = vmatpush1.msra.mxu0 0.0
    %293 = vmatprep.subr.mxu0 0.0
    %294 = vmatpush1.msra.mxu0 0.0
    %295 = vmatprep.subr.mxu0 0.0
    %296 = vmatpush1.msra.mxu0 0.0
    %297 = vmatprep.subr.mxu0 0.0
    %298 = vmatpush1.msra.mxu0 0.0
    %299 = vmatprep.subr.mxu0 0.0
    %300 = vmatpush1.msra.mxu0 0.0
    %301 = vmatprep.subr.mxu0 0.0
    %302 = vmatpush1.msra.mxu0 0.0
    %303 = vmatprep.subr.mxu0 0.0
    %304 = vmatpush1.msra.mxu0 0.0
    %305 = vmatprep.subr.mxu0 0.0
    %306 = vmatpush1.msra.mxu0 0.0
    %307 = vmatprep.subr.mxu0 0.0
    %308 = vmatpush1.msra.mxu0 0.0
    %309 = vmatprep.subr.mxu0 0.0
    %310 = vmatpush1.msra.mxu0 0.0
    %311 = vmatprep.subr.mxu0 0.0
    %312 = vmatpush1.msra.mxu0 0.0
    %313 = vmatprep.subr.mxu0 0.0
    %314 = vmatpush1.msra.mxu0 0.0
    %315 = vmatprep.subr.mxu0 0.0
    %316 = vmatpush1.msra.mxu0 0.0
    %317 = vmatprep.subr.mxu0 0.0
    %318 = vmatpush1.msra.mxu0 0.0
    %319 = vmatprep.subr.mxu0 0.0
    %320 = vmatpush1.msra.mxu0 0.0
    %321 = vmatprep.subr.mxu0 0.0
    %322 = vmatpush1.msra.mxu0 0.0
    %323 = vmatprep.subr.mxu0 0.0
    %324 = vmatpush1.msra.mxu0 0.0
    %325 = vmatprep.subr.mxu0 0.0
    %326 = vmatpush1.msra.mxu0 0.0
    %327 = vmatprep.subr.mxu0 0.0
    %328 = vmatpush1.msra.mxu0 0.0
    %329 = vmatprep.subr.mxu0 0.0
    %330 = vmatpush1.msra.mxu0 0.0
    %331 = vmatprep.subr.mxu0 0.0
    %332 = vmatpush1.msra.mxu0 0.0
    %333 = vmatprep.subr.mxu0 0.0
    %334 = vmatpush1.msra.mxu0 0.0
    %335 = vmatprep.subr.mxu0 0.0
    %336 = vmatpush1.msra.mxu0 0.0
    %337 = vmatprep.subr.mxu0 0.0
    %338 = vmatpush1.msra.mxu0 0.0
    %339 = vmatprep.subr.mxu0 0.0
    %340 = vmatpush1.msra.mxu0 0.0
    %341 = vmatprep.subr.mxu0 0.0
    %342 = vmatpush1.msra.mxu0 0.0
    %343 = vmatprep.subr.mxu0 0.0
    %344 = vmatpush1.msra.mxu0 0.0
    %345 = vmatprep.subr.mxu0 0.0
    %346 = vmatpush1.msra.mxu0 0.0
    %347 = vmatprep.mubr.f32.mxu0 0.0
    %348 = vmatmul.mubr.f32.gmra.mrb[0].mxu0 %v278
    %v349 = vpop.f32.mrb[0].mxu0
    %v350 = vadd.f32 0.0, %v349
    %v351 = vpop.f32.mrb[0].mxu0
    %352 = vmatprep.mubr.f32.mxu0 0.0
    %353 = vmatmul.mubr.f32.gmra.mrb[0].mxu0 %v281
    %v354 = vpop.f32.mrb[0].mxu0
    %v355 = vadd.f32 0.0, %v354
    %v356 = vpop.f32.mrb[0].mxu0
    %357 = vdwg.mxu0
    %v358 = vsub.f32 %v186, %v267
    %v359 = vsub.f32 %v191, %v272
    %v360 = vsub.f32 %v350, %v186
    %v361 = vsub.f32 %v355, %v191
    %v362 = vsub.f32 %v360, %v267
    %v363 = vsub.f32 %v361, %v272
    %v364 = vld [vmem:[#allocation3] sm:$0xff]
    %v365 = vld [vmem:[#allocation3 + $0x8] sm:$0xff]
    %v366 = vld [vmem:[#allocation8] sm:$0xff]
    %v367 = vld [vmem:[#allocation8 + $0x8] sm:$0xff]
    %s368 = scalar_lea.vmem [#allocation8], 16
    %v369 = vld [vmem:[%s368] sm:$0xff]
    %v370 = vld [vmem:[%s368 + $0x8] sm:$0xff]
    %v372 = vsel %vm112, %v358, 0
    %v375 = vsel %vm112, %v359, 0
    %377 = vmatprep.subr.mxu0 0.0
    %378 = vmatpush1.msra.mxu0 %v94
    %379 = vmatprep.subr.mxu0 0.0
    %380 = vmatpush1.msra.mxu0 %v95
    %381 = vmatprep.subr.mxu0 0.0
    %382 = vmatpush1.msra.mxu0 0.0
    %383 = vmatprep.subr.mxu0 0.0
    %384 = vmatpush1.msra.mxu0 0.0
    %385 = vmatprep.subr.mxu0 0.0
    %386 = vmatpush1.msra.mxu0 0.0
    %387 = vmatprep.subr.mxu0 0.0
    %388 = vmatpush1.msra.mxu0 0.0
    %389 = vmatprep.subr.mxu0 0.0
    %390 = vmatpush1.msra.mxu0 0.0
    %391 = vmatprep.subr.mxu0 0.0
    %392 = vmatpush1.msra.mxu0 0.0
    %393 = vmatprep.subr.mxu0 0.0
    %394 = vmatpush1.msra.mxu0 0.0
    %395 = vmatprep.subr.mxu0 0.0
    %396 = vmatpush1.msra.mxu0 0.0
    %397 = vmatprep.subr.mxu0 0.0
    %398 = vmatpush1.msra.mxu0 0.0
    %399 = vmatprep.subr.mxu0 0.0
    %400 = vmatpush1.msra.mxu0 0.0
    %401 = vmatprep.subr.mxu0 0.0
    %402 = vmatpush1.msra.mxu0 0.0
    %403 = vmatprep.subr.mxu0 0.0
    %404 = vmatpush1.msra.mxu0 0.0
    %405 = vmatprep.subr.mxu0 0.0
    %406 = vmatpush1.msra.mxu0 0.0
    %407 = vmatprep.subr.mxu0 0.0
    %408 = vmatpush1.msra.mxu0 0.0
    %409 = vmatprep.subr.mxu0 0.0
    %410 = vmatpush1.msra.mxu0 0.0
    %411 = vmatprep.subr.mxu0 0.0
    %412 = vmatpush1.msra.mxu0 0.0
    %413 = vmatprep.subr.mxu0 0.0
    %414 = vmatpush1.msra.mxu0 0.0
    %415 = vmatprep.subr.mxu0 0.0
    %416 = vmatpush1.msra.mxu0 0.0
    %417 = vmatprep.subr.mxu0 0.0
    %418 = vmatpush1.msra.mxu0 0.0
    %419 = vmatprep.subr.mxu0 0.0
    %420 = vmatpush1.msra.mxu0 0.0
    %421 = vmatprep.subr.mxu0 0.0
    %422 = vmatpush1.msra.mxu0 0.0
    %423 = vmatprep.subr.mxu0 0.0
    %424 = vmatpush1.msra.mxu0 0.0
    %425 = vmatprep.subr.mxu0 0.0
    %426 = vmatpush1.msra.mxu0 0.0
    %427 = vmatprep.subr.mxu0 0.0
    %428 = vmatpush1.msra.mxu0 0.0
    %429 = vmatprep.subr.mxu0 0.0
    %430 = vmatpush1.msra.mxu0 0.0
    %431 = vmatprep.subr.mxu0 0.0
    %432 = vmatpush1.msra.mxu0 0.0
    %433 = vmatprep.subr.mxu0 0.0
    %434 = vmatpush1.msra.mxu0 0.0
    %435 = vmatprep.subr.mxu0 0.0
    %436 = vmatpush1.msra.mxu0 0.0
    %437 = vmatprep.subr.mxu0 0.0
    %438 = vmatpush1.msra.mxu0 0.0
    %439 = vmatprep.subr.mxu0 0.0
    %440 = vmatpush1.msra.mxu0 0.0
    %441 = vmatprep.mubr.f32.mxu0 0.0
    %442 = vmatmul.mubr.f32.gmra.mrb[0].mxu0 %v372
    %v443 = vpop.f32.mrb[0].mxu0
    %v444 = vadd.f32 0.0, %v443
    %v445 = vpop.f32.mrb[0].mxu0
    %446 = vmatprep.mubr.f32.mxu0 0.0
    %447 = vmatmul.mubr.f32.gmra.mrb[0].mxu0 %v375
    %v448 = vpop.f32.mrb[0].mxu0
    %v449 = vadd.f32 0.0, %v448
    %v450 = vpop.f32.mrb[0].mxu0
    %451 = vdwg.mxu0
    %v453 = vsel %vm112, %v362, 0
    %v456 = vsel %vm112, %v363, 0
    %458 = vmatprep.subr.mxu0 0.0
    %459 = vmatpush1.msra.mxu0 %v97
    %460 = vmatprep.subr.mxu0 0.0
    %461 = vmatpush1.msra.mxu0 %v98
    %462 = vmatprep.subr.mxu0 0.0
    %463 = vmatpush1.msra.mxu0 0.0
    %464 = vmatprep.subr.mxu0 0.0
    %465 = vmatpush1.msra.mxu0 0.0
    %466 = vmatprep.subr.mxu0 0.0
    %467 = vmatpush1.msra.mxu0 0.0
    %468 = vmatprep.subr.mxu0 0.0
    %469 = vmatpush1.msra.mxu0 0.0
    %470 = vmatprep.subr.mxu0 0.0
    %471 = vmatpush1.msra.mxu0 0.0
    %472 = vmatprep.subr.mxu0 0.0
    %473 = vmatpush1.msra.mxu0 0.0
    %474 = vmatprep.subr.mxu0 0.0
    %475 = vmatpush1.msra.mxu0 0.0
    %476 = vmatprep.subr.mxu0 0.0
    %477 = vmatpush1.msra.mxu0 0.0
    %478 = vmatprep.subr.mxu0 0.0
    %479 = vmatpush1.msra.mxu0 0.0
    %480 = vmatprep.subr.mxu0 0.0
    %481 = vmatpush1.msra.mxu0 0.0
    %482 = vmatprep.subr.mxu0 0.0
    %483 = vmatpush1.msra.mxu0 0.0
    %484 = vmatprep.subr.mxu0 0.0
    %485 = vmatpush1.msra.mxu0 0.0
    %486 = vmatprep.subr.mxu0 0.0
    %487 = vmatpush1.msra.mxu0 0.0
    %488 = vmatprep.subr.mxu0 0.0
    %489 = vmatpush1.msra.mxu0 0.0
    %490 = vmatprep.subr.mxu0 0.0
    %491 = vmatpush1.msra.mxu0 0.0
    %492 = vmatprep.subr.mxu0 0.0
    %493 = vmatpush1.msra.mxu0 0.0
    %494 = vmatprep.subr.mxu0 0.0
    %495 = vmatpush1.msra.mxu0 0.0
    %496 = vmatprep.subr.mxu0 0.0
    %497 = vmatpush1.msra.mxu0 0.0
    %498 = vmatprep.subr.mxu0 0.0
    %499 = vmatpush1.msra.mxu0 0.0
    %500 = vmatprep.subr.mxu0 0.0
    %501 = vmatpush1.msra.mxu0 0.0
    %502 = vmatprep.subr.mxu0 0.0
    %503 = vmatpush1.msra.mxu0 0.0
    %504 = vmatprep.subr.mxu0 0.0
    %505 = vmatpush1.msra.mxu0 0.0
    %506 = vmatprep.subr.mxu0 0.0
    %507 = vmatpush1.msra.mxu0 0.0
    %508 = vmatprep.subr.mxu0 0.0
    %509 = vmatpush1.msra.mxu0 0.0
    %510 = vmatprep.subr.mxu0 0.0
    %511 = vmatpush1.msra.mxu0 0.0
    %512 = vmatprep.subr.mxu0 0.0
    %513 = vmatpush1.msra.mxu0 0.0
    %514 = vmatprep.subr.mxu0 0.0
    %515 = vmatpush1.msra.mxu0 0.0
    %516 = vmatprep.subr.mxu0 0.0
    %517 = vmatpush1.msra.mxu0 0.0
    %518 = vmatprep.subr.mxu0 0.0
    %519 = vmatpush1.msra.mxu0 0.0
    %520 = vmatprep.subr.mxu0 0.0
    %521 = vmatpush1.msra.mxu0 0.0
    %522 = vmatprep.mubr.f32.mxu0 0.0
    %523 = vmatmul.mubr.f32.gmra.mrb[0].mxu0 %v453
    %v524 = vpop.f32.mrb[0].mxu0
    %v525 = vadd.f32 0.0, %v524
    %v526 = vpop.f32.mrb[0].mxu0
    %527 = vmatprep.mubr.f32.mxu0 0.0
    %528 = vmatmul.mubr.f32.gmra.mrb[0].mxu0 %v456
    %v529 = vpop.f32.mrb[0].mxu0
    %v530 = vadd.f32 0.0, %v529
    %v531 = vpop.f32.mrb[0].mxu0
    %532 = vdwg.mxu0
    %v533 = vadd.f32 %v358, %v362
    %v534 = vadd.f32 %v359, %v363
    %v536 = vsel %vm112, %v533, 0
    %v539 = vsel %vm112, %v534, 0
    %541 = vmatprep.subr.mxu0 0.0
    %542 = vmatpush1.msra.mxu0 %v103
    %543 = vmatprep.subr.mxu0 0.0
    %544 = vmatpush1.msra.mxu0 %v104
    %545 = vmatprep.subr.mxu0 0.0
    %546 = vmatpush1.msra.mxu0 0.0
    %547 = vmatprep.subr.mxu0 0.0
    %548 = vmatpush1.msra.mxu0 0.0
    %549 = vmatprep.subr.mxu0 0.0
    %550 = vmatpush1.msra.mxu0 0.0
    %551 = vmatprep.subr.mxu0 0.0
    %552 = vmatpush1.msra.mxu0 0.0
    %553 = vmatprep.subr.mxu0 0.0
    %554 = vmatpush1.msra.mxu0 0.0
    %555 = vmatprep.subr.mxu0 0.0
    %556 = vmatpush1.msra.mxu0 0.0
    %557 = vmatprep.subr.mxu0 0.0
    %558 = vmatpush1.msra.mxu0 0.0
    %559 = vmatprep.subr.mxu0 0.0
    %560 = vmatpush1.msra.mxu0 0.0
    %561 = vmatprep.subr.mxu0 0.0
    %562 = vmatpush1.msra.mxu0 0.0
    %563 = vmatprep.subr.mxu0 0.0
    %564 = vmatpush1.msra.mxu0 0.0
    %565 = vmatprep.subr.mxu0 0.0
    %566 = vmatpush1.msra.mxu0 0.0
    %567 = vmatprep.subr.mxu0 0.0
    %568 = vmatpush1.msra.mxu0 0.0
    %569 = vmatprep.subr.mxu0 0.0
    %570 = vmatpush1.msra.mxu0 0.0
    %571 = vmatprep.subr.mxu0 0.0
    %572 = vmatpush1.msra.mxu0 0.0
    %573 = vmatprep.subr.mxu0 0.0
    %574 = vmatpush1.msra.mxu0 0.0
    %575 = vmatprep.subr.mxu0 0.0
    %576 = vmatpush1.msra.mxu0 0.0
    %577 = vmatprep.subr.mxu0 0.0
    %578 = vmatpush1.msra.mxu0 0.0
    %579 = vmatprep.subr.mxu0 0.0
    %580 = vmatpush1.msra.mxu0 0.0
    %581 = vmatprep.subr.mxu0 0.0
    %582 = vmatpush1.msra.mxu0 0.0
    %583 = vmatprep.subr.mxu0 0.0
    %584 = vmatpush1.msra.mxu0 0.0
    %585 = vmatprep.subr.mxu0 0.0
    %586 = vmatpush1.msra.mxu0 0.0
    %587 = vmatprep.subr.mxu0 0.0
    %588 = vmatpush1.msra.mxu0 0.0
    %589 = vmatprep.subr.mxu0 0.0
    %590 = vmatpush1.msra.mxu0 0.0
    %591 = vmatprep.subr.mxu0 0.0
    %592 = vmatpush1.msra.mxu0 0.0
    %593 = vmatprep.subr.mxu0 0.0
    %594 = vmatpush1.msra.mxu0 0.0
    %595 = vmatprep.subr.mxu0 0.0
    %596 = vmatpush1.msra.mxu0 0.0
    %597 = vmatprep.subr.mxu0 0.0
    %598 = vmatpush1.msra.mxu0 0.0
    %599 = vmatprep.subr.mxu0 0.0
    %600 = vmatpush1.msra.mxu0 0.0
    %601 = vmatprep.subr.mxu0 0.0
    %602 = vmatpush1.msra.mxu0 0.0
    %603 = vmatprep.subr.mxu0 0.0
    %604 = vmatpush1.msra.mxu0 0.0
    %605 = vmatprep.mubr.f32.mxu0 0.0
    %606 = vmatmul.mubr.f32.gmra.mrb[0].mxu0 %v536
    %v607 = vpop.f32.mrb[0].mxu0
    %v608 = vadd.f32 0.0, %v607
    %v609 = vpop.f32.mrb[0].mxu0
    %610 = vmatprep.mubr.f32.mxu0 0.0
    %611 = vmatmul.mubr.f32.gmra.mrb[0].mxu0 %v539
    %v612 = vpop.f32.mrb[0].mxu0
    %v613 = vadd.f32 0.0, %v612
    %v614 = vpop.f32.mrb[0].mxu0
    %615 = vdwg.mxu0
    %v616 = vsub.f32 %v444, %v525
    %v617 = vsub.f32 %v449, %v530
    %v618 = vsub.f32 %v608, %v444
    %v619 = vsub.f32 %v613, %v449
    %v620 = vsub.f32 %v618, %v525
    %v621 = vsub.f32 %v619, %v530
    %v622 = vsub.f32 1.0, %v364
    %v623 = vsub.f32 1.0, %v365
    %v624 = vmul.f32 %v622, %v616
    %v625 = vmul.f32 %v623, %v617
    %v626 = vadd.f32 %v624, %v366
    %v627 = vadd.f32 %v625, %v367
    %v628 = vmul.f32 %v622, %v620
    %v629 = vmul.f32 %v623, %v621
    %v630 = vadd.f32 %v628, %v369
    %v631 = vadd.f32 %v629, %v370
    %v633 = vsel %vm112, %v626, 0
    %v636 = vsel %vm112, %v627, 0
    %638 = vmatprep.subr.mxu0 0.0
    %639 = vmatpush1.msra.mxu0 %v94
    %640 = vmatprep.subr.mxu0 0.0
    %641 = vmatpush1.msra.mxu0 %v95
    %642 = vmatprep.subr.mxu0 0.0
    %643 = vmatpush1.msra.mxu0 0.0
    %644 = vmatprep.subr.mxu0 0.0
    %645 = vmatpush1.msra.mxu0 0.0
    %646 = vmatprep.subr.mxu0 0.0
    %647 = vmatpush1.msra.mxu0 0.0
    %648 = vmatprep.subr.mxu0 0.0
    %649 = vmatpush1.msra.mxu0 0.0
    %650 = vmatprep.subr.mxu0 0.0
    %651 = vmatpush1.msra.mxu0 0.0
    %652 = vmatprep.subr.mxu0 0.0
    %653 = vmatpush1.msra.mxu0 0.0
    %654 = vmatprep.subr.mxu0 0.0
    %655 = vmatpush1.msra.mxu0 0.0
    %656 = vmatprep.subr.mxu0 0.0
    %657 = vmatpush1.msra.mxu0 0.0
    %658 = vmatprep.subr.mxu0 0.0
    %659 = vmatpush1.msra.mxu0 0.0
    %660 = vmatprep.subr.mxu0 0.0
    %661 = vmatpush1.msra.mxu0 0.0
    %662 = vmatprep.subr.mxu0 0.0
    %663 = vmatpush1.msra.mxu0 0.0
    %664 = vmatprep.subr.mxu0 0.0
    %665 = vmatpush1.msra.mxu0 0.0
    %666 = vmatprep.subr.mxu0 0.0
    %667 = vmatpush1.msra.mxu0 0.0
    %668 = vmatprep.subr.mxu0 0.0
    %669 = vmatpush1.msra.mxu0 0.0
    %670 = vmatprep.subr.mxu0 0.0
    %671 = vmatpush1.msra.mxu0 0.0
    %672 = vmatprep.subr.mxu0 0.0
    %673 = vmatpush1.msra.mxu0 0.0
    %674 = vmatprep.subr.mxu0 0.0
    %675 = vmatpush1.msra.mxu0 0.0
    %676 = vmatprep.subr.mxu0 0.0
    %677 = vmatpush1.msra.mxu0 0.0
    %678 = vmatprep.subr.mxu0 0.0
    %679 = vmatpush1.msra.mxu0 0.0
    %680 = vmatprep.subr.mxu0 0.0
    %681 = vmatpush1.msra.mxu0 0.0
    %682 = vmatprep.subr.mxu0 0.0
    %683 = vmatpush1.msra.mxu0 0.0
    %684 = vmatprep.subr.mxu0 0.0
    %685 = vmatpush1.msra.mxu0 0.0
    %686 = vmatprep.subr.mxu0 0.0
    %687 = vmatpush1.msra.mxu0 0.0
    %688 = vmatprep.subr.mxu0 0.0
    %689 = vmatpush1.msra.mxu0 0.0
    %690 = vmatprep.subr.mxu0 0.0
    %691 = vmatpush1.msra.mxu0 0.0
    %692 = vmatprep.subr.mxu0 0.0
    %693 = vmatpush1.msra.mxu0 0.0
    %694 = vmatprep.subr.mxu0 0.0
    %695 = vmatpush1.msra.mxu0 0.0
    %696 = vmatprep.subr.mxu0 0.0
    %697 = vmatpush1.msra.mxu0 0.0
    %698 = vmatprep.subr.mxu0 0.0
    %699 = vmatpush1.msra.mxu0 0.0
    %700 = vmatprep.subr.mxu0 0.0
    %701 = vmatpush1.msra.mxu0 0.0
    %702 = vmatprep.mubr.f32.mxu0 0.0
    %703 = vmatmul.mubr.f32.gmra.mrb[0].mxu0 %v633
    %v704 = vpop.f32.mrb[0].mxu0
    %v705 = vadd.f32 0.0, %v704
    %v706 = vpop.f32.mrb[0].mxu0
    %707 = vmatprep.mubr.f32.mxu0 0.0
    %708 = vmatmul.mubr.f32.gmra.mrb[0].mxu0 %v636
    %v709 = vpop.f32.mrb[0].mxu0
    %v710 = vadd.f32 0.0, %v709
    %v711 = vpop.f32.mrb[0].mxu0
    %712 = vdwg.mxu0
    %v714 = vsel %vm112, %v630, 0
    %v717 = vsel %vm112, %v631, 0
    %719 = vmatprep.subr.mxu0 0.0
    %720 = vmatpush1.msra.mxu0 %v97
    %721 = vmatprep.subr.mxu0 0.0
    %722 = vmatpush1.msra.mxu0 %v98
    %723 = vmatprep.subr.mxu0 0.0
    %724 = vmatpush1.msra.mxu0 0.0
    %725 = vmatprep.subr.mxu0 0.0
    %726 = vmatpush1.msra.mxu0 0.0
    %727 = vmatprep.subr.mxu0 0.0
    %728 = vmatpush1.msra.mxu0 0.0
    %729 = vmatprep.subr.mxu0 0.0
    %730 = vmatpush1.msra.mxu0 0.0
    %731 = vmatprep.subr.mxu0 0.0
    %732 = vmatpush1.msra.mxu0 0.0
    %733 = vmatprep.subr.mxu0 0.0
    %734 = vmatpush1.msra.mxu0 0.0
    %735 = vmatprep.subr.mxu0 0.0
    %736 = vmatpush1.msra.mxu0 0.0
    %737 = vmatprep.subr.mxu0 0.0
    %738 = vmatpush1.msra.mxu0 0.0
    %739 = vmatprep.subr.mxu0 0.0
    %740 = vmatpush1.msra.mxu0 0.0
    %741 = vmatprep.subr.mxu0 0.0
    %742 = vmatpush1.msra.mxu0 0.0
    %743 = vmatprep.subr.mxu0 0.0
    %744 = vmatpush1.msra.mxu0 0.0
    %745 = vmatprep.subr.mxu0 0.0
    %746 = vmatpush1.msra.mxu0 0.0
    %747 = vmatprep.subr.mxu0 0.0
    %748 = vmatpush1.msra.mxu0 0.0
    %749 = vmatprep.subr.mxu0 0.0
    %750 = vmatpush1.msra.mxu0 0.0
    %751 = vmatprep.subr.mxu0 0.0
    %752 = vmatpush1.msra.mxu0 0.0
    %753 = vmatprep.subr.mxu0 0.0
    %754 = vmatpush1.msra.mxu0 0.0
    %755 = vmatprep.subr.mxu0 0.0
    %756 = vmatpush1.msra.mxu0 0.0
    %757 = vmatprep.subr.mxu0 0.0
    %758 = vmatpush1.msra.mxu0 0.0
    %759 = vmatprep.subr.mxu0 0.0
    %760 = vmatpush1.msra.mxu0 0.0
    %761 = vmatprep.subr.mxu0 0.0
    %762 = vmatpush1.msra.mxu0 0.0
    %763 = vmatprep.subr.mxu0 0.0
    %764 = vmatpush1.msra.mxu0 0.0
    %765 = vmatprep.subr.mxu0 0.0
    %766 = vmatpush1.msra.mxu0 0.0
    %767 = vmatprep.subr.mxu0 0.0
    %768 = vmatpush1.msra.mxu0 0.0
    %769 = vmatprep.subr.mxu0 0.0
    %770 = vmatpush1.msra.mxu0 0.0
    %771 = vmatprep.subr.mxu0 0.0
    %772 = vmatpush1.msra.mxu0 0.0
    %773 = vmatprep.subr.mxu0 0.0
    %774 = vmatpush1.msra.mxu0 0.0
    %775 = vmatprep.subr.mxu0 0.0
    %776 = vmatpush1.msra.mxu0 0.0
    %777 = vmatprep.subr.mxu0 0.0
    %778 = vmatpush1.msra.mxu0 0.0
    %779 = vmatprep.subr.mxu0 0.0
    %780 = vmatpush1.msra.mxu0 0.0
    %781 = vmatprep.subr.mxu0 0.0
    %782 = vmatpush1.msra.mxu0 0.0
    %783 = vmatprep.mubr.f32.mxu0 0.0
    %784 = vmatmul.mubr.f32.gmra.mrb[0].mxu0 %v714
    %v785 = vpop.f32.mrb[0].mxu0
    %v786 = vadd.f32 0.0, %v785
    %v787 = vpop.f32.mrb[0].mxu0
    %788 = vmatprep.mubr.f32.mxu0 0.0
    %789 = vmatmul.mubr.f32.gmra.mrb[0].mxu0 %v717
    %v790 = vpop.f32.mrb[0].mxu0
    %v791 = vadd.f32 0.0, %v790
    %v792 = vpop.f32.mrb[0].mxu0
    %793 = vdwg.mxu0
    %v794 = vadd.f32 %v626, %v630
    %v795 = vadd.f32 %v627, %v631
    %v797 = vsel %vm112, %v794, 0
    %v800 = vsel %vm112, %v795, 0
    %802 = vmatprep.subr.mxu0 0.0
    %803 = vmatpush1.msra.mxu0 %v105
    %804 = vmatprep.subr.mxu0 0.0
    %805 = vmatpush1.msra.mxu0 %v106
    %806 = vmatprep.subr.mxu0 0.0
    %807 = vmatpush1.msra.mxu0 0.0
    %808 = vmatprep.subr.mxu0 0.0
    %809 = vmatpush1.msra.mxu0 0.0
    %810 = vmatprep.subr.mxu0 0.0
    %811 = vmatpush1.msra.mxu0 0.0
    %812 = vmatprep.subr.mxu0 0.0
    %813 = vmatpush1.msra.mxu0 0.0
    %814 = vmatprep.subr.mxu0 0.0
    %815 = vmatpush1.msra.mxu0 0.0
    %816 = vmatprep.subr.mxu0 0.0
    %817 = vmatpush1.msra.mxu0 0.0
    %818 = vmatprep.subr.mxu0 0.0
    %819 = vmatpush1.msra.mxu0 0.0
    %820 = vmatprep.subr.mxu0 0.0
    %821 = vmatpush1.msra.mxu0 0.0
    %822 = vmatprep.subr.mxu0 0.0
    %823 = vmatpush1.msra.mxu0 0.0
    %824 = vmatprep.subr.mxu0 0.0
    %825 = vmatpush1.msra.mxu0 0.0
    %826 = vmatprep.subr.mxu0 0.0
    %827 = vmatpush1.msra.mxu0 0.0
    %828 = vmatprep.subr.mxu0 0.0
    %829 = vmatpush1.msra.mxu0 0.0
    %830 = vmatprep.subr.mxu0 0.0
    %831 = vmatpush1.msra.mxu0 0.0
    %832 = vmatprep.subr.mxu0 0.0
    %833 = vmatpush1.msra.mxu0 0.0
    %834 = vmatprep.subr.mxu0 0.0
    %835 = vmatpush1.msra.mxu0 0.0
    %836 = vmatprep.subr.mxu0 0.0
    %837 = vmatpush1.msra.mxu0 0.0
    %838 = vmatprep.subr.mxu0 0.0
    %839 = vmatpush1.msra.mxu0 0.0
    %840 = vmatprep.subr.mxu0 0.0
    %841 = vmatpush1.msra.mxu0 0.0
    %842 = vmatprep.subr.mxu0 0.0
    %843 = vmatpush1.msra.mxu0 0.0
    %844 = vmatprep.subr.mxu0 0.0
    %845 = vmatpush1.msra.mxu0 0.0
    %846 = vmatprep.subr.mxu0 0.0
    %847 = vmatpush1.msra.mxu0 0.0
    %848 = vmatprep.subr.mxu0 0.0
    %849 = vmatpush1.msra.mxu0 0.0
    %850 = vmatprep.subr.mxu0 0.0
    %851 = vmatpush1.msra.mxu0 0.0
    %852 = vmatprep.subr.mxu0 0.0
    %853 = vmatpush1.msra.mxu0 0.0
    %854 = vmatprep.subr.mxu0 0.0
    %855 = vmatpush1.msra.mxu0 0.0
    %856 = vmatprep.subr.mxu0 0.0
    %857 = vmatpush1.msra.mxu0 0.0
    %858 = vmatprep.subr.mxu0 0.0
    %859 = vmatpush1.msra.mxu0 0.0
    %860 = vmatprep.subr.mxu0 0.0
    %861 = vmatpush1.msra.mxu0 0.0
    %862 = vmatprep.subr.mxu0 0.0
    %863 = vmatpush1.msra.mxu0 0.0
    %864 = vmatprep.subr.mxu0 0.0
    %865 = vmatpush1.msra.mxu0 0.0
    %866 = vmatprep.mubr.f32.mxu0 0.0
    %867 = vmatmul.mubr.f32.gmra.mrb[0].mxu0 %v797
    %v868 = vpop.f32.mrb[0].mxu0
    %v869 = vadd.f32 0.0, %v868
    %v870 = vpop.f32.mrb[0].mxu0
    %871 = vmatprep.mubr.f32.mxu0 0.0
    %872 = vmatmul.mubr.f32.gmra.mrb[0].mxu0 %v800
    %v873 = vpop.f32.mrb[0].mxu0
    %v874 = vadd.f32 0.0, %v873
    %v875 = vpop.f32.mrb[0].mxu0
    %876 = vdwg.mxu0
    %v877 = vadd.f32 %v705, %v786
    %v878 = vadd.f32 %v710, %v791
    %879 = vst.msk [vmem:[#allocation2] sm:$0xff] %vm112, %v877
    %880 = vst.msk [vmem:[#allocation2 + $0x8] sm:$0xff] %vm112, %v878
    %v881 = vsub.f32 %v869, %v705
    %v882 = vsub.f32 %v874, %v710
    %v883 = vadd.f32 %v881, %v786
    %v884 = vadd.f32 %v882, %v791
    %s885 = scalar_lea.vmem [#allocation2], 16
    %886 = vst.msk [vmem:[%s885] sm:$0xff] %vm112, %v883
    %887 = vst.msk [vmem:[%s885 + $0x8] sm:$0xff] %vm112, %v884
    %888 = vrot.lane.b32.xlu0 %v358, 112
    %v889 = vpop.permute.xlu0 %888
    %890 = vrot.lane.b32.xlu0 %v359, 112
    %v891 = vpop.permute.xlu0 %890
    %v892 = vsel %vm112, %v889, 0
    %v894 = vsel %vm112, %v891, 0
    %896 = vmatprep.subr.mxu0 0.0
    %897 = vmatpush1.msra.mxu0 %v94
    %898 = vmatprep.subr.mxu0 0.0
    %899 = vmatpush1.msra.mxu0 %v95
    %900 = vmatprep.subr.mxu0 0.0
    %901 = vmatpush1.msra.mxu0 0.0
    %902 = vmatprep.subr.mxu0 0.0
    %903 = vmatpush1.msra.mxu0 0.0
    %904 = vmatprep.subr.mxu0 0.0
    %905 = vmatpush1.msra.mxu0 0.0
    %906 = vmatprep.subr.mxu0 0.0
    %907 = vmatpush1.msra.mxu0 0.0
    %908 = vmatprep.subr.mxu0 0.0
    %909 = vmatpush1.msra.mxu0 0.0
    %910 = vmatprep.subr.mxu0 0.0
    %911 = vmatpush1.msra.mxu0 0.0
    %912 = vmatprep.subr.mxu0 0.0
    %913 = vmatpush1.msra.mxu0 0.0
    %914 = vmatprep.subr.mxu0 0.0
    %915 = vmatpush1.msra.mxu0 0.0
    %916 = vmatprep.subr.mxu0 0.0
    %917 = vmatpush1.msra.mxu0 0.0
    %918 = vmatprep.subr.mxu0 0.0
    %919 = vmatpush1.msra.mxu0 0.0
    %920 = vmatprep.subr.mxu0 0.0
    %921 = vmatpush1.msra.mxu0 0.0
    %922 = vmatprep.subr.mxu0 0.0
    %923 = vmatpush1.msra.mxu0 0.0
    %924 = vmatprep.subr.mxu0 0.0
    %925 = vmatpush1.msra.mxu0 0.0
    %926 = vmatprep.subr.mxu0 0.0
    %927 = vmatpush1.msra.mxu0 0.0
    %928 = vmatprep.subr.mxu0 0.0
    %929 = vmatpush1.msra.mxu0 0.0
    %930 = vmatprep.subr.mxu0 0.0
    %931 = vmatpush1.msra.mxu0 0.0
    %932 = vmatprep.subr.mxu0 0.0
    %933 = vmatpush1.msra.mxu0 0.0
    %934 = vmatprep.subr.mxu0 0.0
    %935 = vmatpush1.msra.mxu0 0.0
    %936 = vmatprep.subr.mxu0 0.0
    %937 = vmatpush1.msra.mxu0 0.0
    %938 = vmatprep.subr.mxu0 0.0
    %939 = vmatpush1.msra.mxu0 0.0
    %940 = vmatprep.subr.mxu0 0.0
    %941 = vmatpush1.msra.mxu0 0.0
    %942 = vmatprep.subr.mxu0 0.0
    %943 = vmatpush1.msra.mxu0 0.0
    %944 = vmatprep.subr.mxu0 0.0
    %945 = vmatpush1.msra.mxu0 0.0
    %946 = vmatprep.subr.mxu0 0.0
    %947 = vmatpush1.msra.mxu0 0.0
    %948 = vmatprep.subr.mxu0 0.0
    %949 = vmatpush1.msra.mxu0 0.0
    %950 = vmatprep.subr.mxu0 0.0
    %951 = vmatpush1.msra.mxu0 0.0
    %952 = vmatprep.subr.mxu0 0.0
    %953 = vmatpush1.msra.mxu0 0.0
    %954 = vmatprep.subr.mxu0 0.0
    %955 = vmatpush1.msra.mxu0 0.0
    %956 = vmatprep.subr.mxu0 0.0
    %957 = vmatpush1.msra.mxu0 0.0
    %958 = vmatprep.subr.mxu0 0.0
    %959 = vmatpush1.msra.mxu0 0.0
    %960 = vmatprep.mubr.f32.mxu0 0.0
    %961 = vmatmul.mubr.f32.gmra.mrb[0].mxu0 %v892
    %v962 = vpop.f32.mrb[0].mxu0
    %v963 = vadd.f32 0.0, %v962
    %v964 = vpop.f32.mrb[0].mxu0
    %965 = vmatprep.mubr.f32.mxu0 0.0
    %966 = vmatmul.mubr.f32.gmra.mrb[0].mxu0 %v894
    %v967 = vpop.f32.mrb[0].mxu0
    %v968 = vadd.f32 0.0, %v967
    %v969 = vpop.f32.mrb[0].mxu0
    %970 = vdwg.mxu0
    %971 = vrot.lane.b32.xlu0 %v362, 112
    %v972 = vpop.permute.xlu0 %971
    %973 = vrot.lane.b32.xlu0 %v363, 112
    %v974 = vpop.permute.xlu0 %973
    %v975 = vsel %vm112, %v972, 0
    %v977 = vsel %vm112, %v974, 0
    %979 = vmatprep.subr.mxu0 0.0
    %980 = vmatpush1.msra.mxu0 %v97
    %981 = vmatprep.subr.mxu0 0.0
    %982 = vmatpush1.msra.mxu0 %v98
    %983 = vmatprep.subr.mxu0 0.0
    %984 = vmatpush1.msra.mxu0 0.0
    %985 = vmatprep.subr.mxu0 0.0
    %986 = vmatpush1.msra.mxu0 0.0
    %987 = vmatprep.subr.mxu0 0.0
    %988 = vmatpush1.msra.mxu0 0.0
    %989 = vmatprep.subr.mxu0 0.0
    %990 = vmatpush1.msra.mxu0 0.0
    %991 = vmatprep.subr.mxu0 0.0
    %992 = vmatpush1.msra.mxu0 0.0
    %993 = vmatprep.subr.mxu0 0.0
    %994 = vmatpush1.msra.mxu0 0.0
    %995 = vmatprep.subr.mxu0 0.0
    %996 = vmatpush1.msra.mxu0 0.0
    %997 = vmatprep.subr.mxu0 0.0
    %998 = vmatpush1.msra.mxu0 0.0
    %999 = vmatprep.subr.mxu0 0.0
    %1000 = vmatpush1.msra.mxu0 0.0
    %1001 = vmatprep.subr.mxu0 0.0
    %1002 = vmatpush1.msra.mxu0 0.0
    %1003 = vmatprep.subr.mxu0 0.0
    %1004 = vmatpush1.msra.mxu0 0.0
    %1005 = vmatprep.subr.mxu0 0.0
    %1006 = vmatpush1.msra.mxu0 0.0
    %1007 = vmatprep.subr.mxu0 0.0
    %1008 = vmatpush1.msra.mxu0 0.0
    %1009 = vmatprep.subr.mxu0 0.0
    %1010 = vmatpush1.msra.mxu0 0.0
    %1011 = vmatprep.subr.mxu0 0.0
    %1012 = vmatpush1.msra.mxu0 0.0
    %1013 = vmatprep.subr.mxu0 0.0
    %1014 = vmatpush1.msra.mxu0 0.0
    %1015 = vmatprep.subr.mxu0 0.0
    %1016 = vmatpush1.msra.mxu0 0.0
    %1017 = vmatprep.subr.mxu0 0.0
    %1018 = vmatpush1.msra.mxu0 0.0
    %1019 = vmatprep.subr.mxu0 0.0
    %1020 = vmatpush1.msra.mxu0 0.0
    %1021 = vmatprep.subr.mxu0 0.0
    %1022 = vmatpush1.msra.mxu0 0.0
    %1023 = vmatprep.subr.mxu0 0.0
    %1024 = vmatpush1.msra.mxu0 0.0
    %1025 = vmatprep.subr.mxu0 0.0
    %1026 = vmatpush1.msra.mxu0 0.0
    %1027 = vmatprep.subr.mxu0 0.0
    %1028 = vmatpush1.msra.mxu0 0.0
    %1029 = vmatprep.subr.mxu0 0.0
    %1030 = vmatpush1.msra.mxu0 0.0
    %1031 = vmatprep.subr.mxu0 0.0
    %1032 = vmatpush1.msra.mxu0 0.0
    %1033 = vmatprep.subr.mxu0 0.0
    %1034 = vmatpush1.msra.mxu0 0.0
    %1035 = vmatprep.subr.mxu0 0.0
    %1036 = vmatpush1.msra.mxu0 0.0
    %1037 = vmatprep.subr.mxu0 0.0
    %1038 = vmatpush1.msra.mxu0 0.0
    %1039 = vmatprep.subr.mxu0 0.0
    %1040 = vmatpush1.msra.mxu0 0.0
    %1041 = vmatprep.subr.mxu0 0.0
    %1042 = vmatpush1.msra.mxu0 0.0
    %1043 = vmatprep.mubr.f32.mxu0 0.0
    %1044 = vmatmul.mubr.f32.gmra.mrb[0].mxu0 %v975
    %v1045 = vpop.f32.mrb[0].mxu0
    %v1046 = vadd.f32 0.0, %v1045
    %v1047 = vpop.f32.mrb[0].mxu0
    %1048 = vmatprep.mubr.f32.mxu0 0.0
    %1049 = vmatmul.mubr.f32.gmra.mrb[0].mxu0 %v977
    %v1050 = vpop.f32.mrb[0].mxu0
    %v1051 = vadd.f32 0.0, %v1050
    %v1052 = vpop.f32.mrb[0].mxu0
    %1053 = vdwg.mxu0
    %1054 = vrot.lane.b32.xlu0 %v533, 112
    %v1055 = vpop.permute.xlu0 %1054
    %1056 = vrot.lane.b32.xlu0 %v534, 112
    %v1057 = vpop.permute.xlu0 %1056
    %v1058 = vsel %vm112, %v1055, 0
    %v1060 = vsel %vm112, %v1057, 0
    %1062 = vmatprep.subr.mxu0 0.0
    %1063 = vmatpush1.msra.mxu0 %v103
    %1064 = vmatprep.subr.mxu0 0.0
    %1065 = vmatpush1.msra.mxu0 %v104
    %1066 = vmatprep.subr.mxu0 0.0
    %1067 = vmatpush1.msra.mxu0 0.0
    %1068 = vmatprep.subr.mxu0 0.0
    %1069 = vmatpush1.msra.mxu0 0.0
    %1070 = vmatprep.subr.mxu0 0.0
    %1071 = vmatpush1.msra.mxu0 0.0
    %1072 = vmatprep.subr.mxu0 0.0
    %1073 = vmatpush1.msra.mxu0 0.0
    %1074 = vmatprep.subr.mxu0 0.0
    %1075 = vmatpush1.msra.mxu0 0.0
    %1076 = vmatprep.subr.mxu0 0.0
    %1077 = vmatpush1.msra.mxu0 0.0
    %1078 = vmatprep.subr.mxu0 0.0
    %1079 = vmatpush1.msra.mxu0 0.0
    %1080 = vmatprep.subr.mxu0 0.0
    %1081 = vmatpush1.msra.mxu0 0.0
    %1082 = vmatprep.subr.mxu0 0.0
    %1083 = vmatpush1.msra.mxu0 0.0
    %1084 = vmatprep.subr.mxu0 0.0
    %1085 = vmatpush1.msra.mxu0 0.0
    %1086 = vmatprep.subr.mxu0 0.0
    %1087 = vmatpush1.msra.mxu0 0.0
    %1088 = vmatprep.subr.mxu0 0.0
    %1089 = vmatpush1.msra.mxu0 0.0
    %1090 = vmatprep.subr.mxu0 0.0
    %1091 = vmatpush1.msra.mxu0 0.0
    %1092 = vmatprep.subr.mxu0 0.0
    %1093 = vmatpush1.msra.mxu0 0.0
    %1094 = vmatprep.subr.mxu0 0.0
    %1095 = vmatpush1.msra.mxu0 0.0
    %1096 = vmatprep.subr.mxu0 0.0
    %1097 = vmatpush1.msra.mxu0 0.0
    %1098 = vmatprep.subr.mxu0 0.0
    %1099 = vmatpush1.msra.mxu0 0.0
    %1100 = vmatprep.subr.mxu0 0.0
    %1101 = vmatpush1.msra.mxu0 0.0
    %1102 = vmatprep.subr.mxu0 0.0
    %1103 = vmatpush1.msra.mxu0 0.0
    %1104 = vmatprep.subr.mxu0 0.0
    %1105 = vmatpush1.msra.mxu0 0.0
    %1106 = vmatprep.subr.mxu0 0.0
    %1107 = vmatpush1.msra.mxu0 0.0
    %1108 = vmatprep.subr.mxu0 0.0
    %1109 = vmatpush1.msra.mxu0 0.0
    %1110 = vmatprep.subr.mxu0 0.0
    %1111 = vmatpush1.msra.mxu0 0.0
    %1112 = vmatprep.subr.mxu0 0.0
    %1113 = vmatpush1.msra.mxu0 0.0
    %1114 = vmatprep.subr.mxu0 0.0
    %1115 = vmatpush1.msra.mxu0 0.0
    %1116 = vmatprep.subr.mxu0 0.0
    %1117 = vmatpush1.msra.mxu0 0.0
    %1118 = vmatprep.subr.mxu0 0.0
    %1119 = vmatpush1.msra.mxu0 0.0
    %1120 = vmatprep.subr.mxu0 0.0
    %1121 = vmatpush1.msra.mxu0 0.0
    %1122 = vmatprep.subr.mxu0 0.0
    %1123 = vmatpush1.msra.mxu0 0.0
    %1124 = vmatprep.subr.mxu0 0.0
    %1125 = vmatpush1.msra.mxu0 0.0
    %1126 = vmatprep.mubr.f32.mxu0 0.0
    %1127 = vmatmul.mubr.f32.gmra.mrb[0].mxu0 %v1058
    %v1128 = vpop.f32.mrb[0].mxu0
    %v1129 = vadd.f32 0.0, %v1128
    %v1130 = vpop.f32.mrb[0].mxu0
    %1131 = vmatprep.mubr.f32.mxu0 0.0
    %1132 = vmatmul.mubr.f32.gmra.mrb[0].mxu0 %v1060
    %v1133 = vpop.f32.mrb[0].mxu0
    %v1134 = vadd.f32 0.0, %v1133
    %v1135 = vpop.f32.mrb[0].mxu0
    %1136 = vdwg.mxu0
    %v1137 = vsub.f32 %v963, %v1046
    %v1138 = vsub.f32 %v968, %v1051
    %v1139 = vsub.f32 %v1129, %v963
    %v1140 = vsub.f32 %v1134, %v968
    %v1141 = vsub.f32 %v1139, %v1046
    %v1142 = vsub.f32 %v1140, %v1051
    %1145 = vrot.lane.b32.xlu0 %v1137, 16
    %v1146 = vpop.permute.xlu0 %1145
    %1147 = vrot.lane.b32.xlu0 %v1138, 16
    %v1148 = vpop.permute.xlu0 %1147
    %v1151 = vmul.f32 %v622, %v1146
    %v1152 = vmul.f32 %v623, %v1148
    %v1153 = vadd.f32 %v1151, %v366
    %v1154 = vadd.f32 %v1152, %v367
    %1157 = vrot.lane.b32.xlu0 %v1141, 16
    %v1158 = vpop.permute.xlu0 %1157
    %1159 = vrot.lane.b32.xlu0 %v1142, 16
    %v1160 = vpop.permute.xlu0 %1159
    %v1163 = vmul.f32 %v622, %v1158
    %v1164 = vmul.f32 %v623, %v1160
    %v1165 = vadd.f32 %v1163, %v369
    %v1166 = vadd.f32 %v1164, %v370
    %1169 = vrot.lane.b32.xlu0 %v1153, 112
    %v1170 = vpop.permute.xlu0 %1169
    %1171 = vrot.lane.b32.xlu0 %v1154, 112
    %v1172 = vpop.permute.xlu0 %1171
    %v1173 = vsel %vm112, %v1170, 0
    %v1175 = vsel %vm112, %v1172, 0
    %1177 = vmatprep.subr.mxu0 0.0
    %1178 = vmatpush1.msra.mxu0 %v94
    %1179 = vmatprep.subr.mxu0 0.0
    %1180 = vmatpush1.msra.mxu0 %v95
    %1181 = vmatprep.subr.mxu0 0.0
    %1182 = vmatpush1.msra.mxu0 0.0
    %1183 = vmatprep.subr.mxu0 0.0
    %1184 = vmatpush1.msra.mxu0 0.0
    %1185 = vmatprep.subr.mxu0 0.0
    %1186 = vmatpush1.msra.mxu0 0.0
    %1187 = vmatprep.subr.mxu0 0.0
    %1188 = vmatpush1.msra.mxu0 0.0
    %1189 = vmatprep.subr.mxu0 0.0
    %1190 = vmatpush1.msra.mxu0 0.0
    %1191 = vmatprep.subr.mxu0 0.0
    %1192 = vmatpush1.msra.mxu0 0.0
    %1193 = vmatprep.subr.mxu0 0.0
    %1194 = vmatpush1.msra.mxu0 0.0
    %1195 = vmatprep.subr.mxu0 0.0
    %1196 = vmatpush1.msra.mxu0 0.0
    %1197 = vmatprep.subr.mxu0 0.0
    %1198 = vmatpush1.msra.mxu0 0.0
    %1199 = vmatprep.subr.mxu0 0.0
    %1200 = vmatpush1.msra.mxu0 0.0
    %1201 = vmatprep.subr.mxu0 0.0
    %1202 = vmatpush1.msra.mxu0 0.0
    %1203 = vmatprep.subr.mxu0 0.0
    %1204 = vmatpush1.msra.mxu0 0.0
    %1205 = vmatprep.subr.mxu0 0.0
    %1206 = vmatpush1.msra.mxu0 0.0
    %1207 = vmatprep.subr.mxu0 0.0
    %1208 = vmatpush1.msra.mxu0 0.0
    %1209 = vmatprep.subr.mxu0 0.0
    %1210 = vmatpush1.msra.mxu0 0.0
    %1211 = vmatprep.subr.mxu0 0.0
    %1212 = vmatpush1.msra.mxu0 0.0
    %1213 = vmatprep.subr.mxu0 0.0
    %1214 = vmatpush1.msra.mxu0 0.0
    %1215 = vmatprep.subr.mxu0 0.0
    %1216 = vmatpush1.msra.mxu0 0.0
    %1217 = vmatprep.subr.mxu0 0.0
    %1218 = vmatpush1.msra.mxu0 0.0
    %1219 = vmatprep.subr.mxu0 0.0
    %1220 = vmatpush1.msra.mxu0 0.0
    %1221 = vmatprep.subr.mxu0 0.0
    %1222 = vmatpush1.msra.mxu0 0.0
    %1223 = vmatprep.subr.mxu0 0.0
    %1224 = vmatpush1.msra.mxu0 0.0
    %1225 = vmatprep.subr.mxu0 0.0
    %1226 = vmatpush1.msra.mxu0 0.0
    %1227 = vmatprep.subr.mxu0 0.0
    %1228 = vmatpush1.msra.mxu0 0.0
    %1229 = vmatprep.subr.mxu0 0.0
    %1230 = vmatpush1.msra.mxu0 0.0
    %1231 = vmatprep.subr.mxu0 0.0
    %1232 = vmatpush1.msra.mxu0 0.0
    %1233 = vmatprep.subr.mxu0 0.0
    %1234 = vmatpush1.msra.mxu0 0.0
    %1235 = vmatprep.subr.mxu0 0.0
    %1236 = vmatpush1.msra.mxu0 0.0
    %1237 = vmatprep.subr.mxu0 0.0
    %1238 = vmatpush1.msra.mxu0 0.0
    %1239 = vmatprep.subr.mxu0 0.0
    %1240 = vmatpush1.msra.mxu0 0.0
    %1241 = vmatprep.mubr.f32.mxu0 0.0
    %1242 = vmatmul.mubr.f32.gmra.mrb[0].mxu0 %v1173
    %v1243 = vpop.f32.mrb[0].mxu0
    %v1244 = vadd.f32 0.0, %v1243
    %v1245 = vpop.f32.mrb[0].mxu0
    %1246 = vmatprep.mubr.f32.mxu0 0.0
    %1247 = vmatmul.mubr.f32.gmra.mrb[0].mxu0 %v1175
    %v1248 = vpop.f32.mrb[0].mxu0
    %v1249 = vadd.f32 0.0, %v1248
    %v1250 = vpop.f32.mrb[0].mxu0
    %1251 = vdwg.mxu0
    %1254 = vrot.lane.b32.xlu0 %v1165, 112
    %v1255 = vpop.permute.xlu0 %1254
    %1256 = vrot.lane.b32.xlu0 %v1166, 112
    %v1257 = vpop.permute.xlu0 %1256
    %v1258 = vsel %vm112, %v1255, 0
    %v1260 = vsel %vm112, %v1257, 0
    %1262 = vmatprep.subr.mxu0 0.0
    %1263 = vmatpush1.msra.mxu0 %v97
    %1264 = vmatprep.subr.mxu0 0.0
    %1265 = vmatpush1.msra.mxu0 %v98
    %1266 = vmatprep.subr.mxu0 0.0
    %1267 = vmatpush1.msra.mxu0 0.0
    %1268 = vmatprep.subr.mxu0 0.0
    %1269 = vmatpush1.msra.mxu0 0.0
    %1270 = vmatprep.subr.mxu0 0.0
    %1271 = vmatpush1.msra.mxu0 0.0
    %1272 = vmatprep.subr.mxu0 0.0
    %1273 = vmatpush1.msra.mxu0 0.0
    %1274 = vmatprep.subr.mxu0 0.0
    %1275 = vmatpush1.msra.mxu0 0.0
    %1276 = vmatprep.subr.mxu0 0.0
    %1277 = vmatpush1.msra.mxu0 0.0
    %1278 = vmatprep.subr.mxu0 0.0
    %1279 = vmatpush1.msra.mxu0 0.0
    %1280 = vmatprep.subr.mxu0 0.0
    %1281 = vmatpush1.msra.mxu0 0.0
    %1282 = vmatprep.subr.mxu0 0.0
    %1283 = vmatpush1.msra.mxu0 0.0
    %1284 = vmatprep.subr.mxu0 0.0
    %1285 = vmatpush1.msra.mxu0 0.0
    %1286 = vmatprep.subr.mxu0 0.0
    %1287 = vmatpush1.msra.mxu0 0.0
    %1288 = vmatprep.subr.mxu0 0.0
    %1289 = vmatpush1.msra.mxu0 0.0
    %1290 = vmatprep.subr.mxu0 0.0
    %1291 = vmatpush1.msra.mxu0 0.0
    %1292 = vmatprep.subr.mxu0 0.0
    %1293 = vmatpush1.msra.mxu0 0.0
    %1294 = vmatprep.subr.mxu0 0.0
    %1295 = vmatpush1.msra.mxu0 0.0
    %1296 = vmatprep.subr.mxu0 0.0
    %1297 = vmatpush1.msra.mxu0 0.0
    %1298 = vmatprep.subr.mxu0 0.0
    %1299 = vmatpush1.msra.mxu0 0.0
    %1300 = vmatprep.subr.mxu0 0.0
    %1301 = vmatpush1.msra.mxu0 0.0
    %1302 = vmatprep.subr.mxu0 0.0
    %1303 = vmatpush1.msra.mxu0 0.0
    %1304 = vmatprep.subr.mxu0 0.0
    %1305 = vmatpush1.msra.mxu0 0.0
    %1306 = vmatprep.subr.mxu0 0.0
    %1307 = vmatpush1.msra.mxu0 0.0
    %1308 = vmatprep.subr.mxu0 0.0
    %1309 = vmatpush1.msra.mxu0 0.0
    %1310 = vmatprep.subr.mxu0 0.0
    %1311 = vmatpush1.msra.mxu0 0.0
    %1312 = vmatprep.subr.mxu0 0.0
    %1313 = vmatpush1.msra.mxu0 0.0
    %1314 = vmatprep.subr.mxu0 0.0
    %1315 = vmatpush1.msra.mxu0 0.0
    %1316 = vmatprep.subr.mxu0 0.0
    %1317 = vmatpush1.msra.mxu0 0.0
    %1318 = vmatprep.subr.mxu0 0.0
    %1319 = vmatpush1.msra.mxu0 0.0
    %1320 = vmatprep.subr.mxu0 0.0
    %1321 = vmatpush1.msra.mxu0 0.0
    %1322 = vmatprep.subr.mxu0 0.0
    %1323 = vmatpush1.msra.mxu0 0.0
    %1324 = vmatprep.subr.mxu0 0.0
    %1325 = vmatpush1.msra.mxu0 0.0
    %1326 = vmatprep.mubr.f32.mxu0 0.0
    %1327 = vmatmul.mubr.f32.gmra.mrb[0].mxu0 %v1258
    %v1328 = vpop.f32.mrb[0].mxu0
    %v1329 = vadd.f32 0.0, %v1328
    %v1330 = vpop.f32.mrb[0].mxu0
    %1331 = vmatprep.mubr.f32.mxu0 0.0
    %1332 = vmatmul.mubr.f32.gmra.mrb[0].mxu0 %v1260
    %v1333 = vpop.f32.mrb[0].mxu0
    %v1334 = vadd.f32 0.0, %v1333
    %v1335 = vpop.f32.mrb[0].mxu0
    %1336 = vdwg.mxu0
    %v1337 = vadd.f32 %v1153, %v1165
    %v1338 = vadd.f32 %v1154, %v1166
    %1341 = vrot.lane.b32.xlu0 %v1337, 112
    %v1342 = vpop.permute.xlu0 %1341
    %1343 = vrot.lane.b32.xlu0 %v1338, 112
    %v1344 = vpop.permute.xlu0 %1343
    %v1345 = vsel %vm112, %v1342, 0
    %v1347 = vsel %vm112, %v1344, 0
    %1349 = vmatprep.subr.mxu0 0.0
    %1350 = vmatpush1.msra.mxu0 %v105
    %1351 = vmatprep.subr.mxu0 0.0
    %1352 = vmatpush1.msra.mxu0 %v106
    %1353 = vmatprep.subr.mxu0 0.0
    %1354 = vmatpush1.msra.mxu0 0.0
    %1355 = vmatprep.subr.mxu0 0.0
    %1356 = vmatpush1.msra.mxu0 0.0
    %1357 = vmatprep.subr.mxu0 0.0
    %1358 = vmatpush1.msra.mxu0 0.0
    %1359 = vmatprep.subr.mxu0 0.0
    %1360 = vmatpush1.msra.mxu0 0.0
    %1361 = vmatprep.subr.mxu0 0.0
    %1362 = vmatpush1.msra.mxu0 0.0
    %1363 = vmatprep.subr.mxu0 0.0
    %1364 = vmatpush1.msra.mxu0 0.0
    %1365 = vmatprep.subr.mxu0 0.0
    %1366 = vmatpush1.msra.mxu0 0.0
    %1367 = vmatprep.subr.mxu0 0.0
    %1368 = vmatpush1.msra.mxu0 0.0
    %1369 = vmatprep.subr.mxu0 0.0
    %1370 = vmatpush1.msra.mxu0 0.0
    %1371 = vmatprep.subr.mxu0 0.0
    %1372 = vmatpush1.msra.mxu0 0.0
    %1373 = vmatprep.subr.mxu0 0.0
    %1374 = vmatpush1.msra.mxu0 0.0
    %1375 = vmatprep.subr.mxu0 0.0
    %1376 = vmatpush1.msra.mxu0 0.0
    %1377 = vmatprep.subr.mxu0 0.0
    %1378 = vmatpush1.msra.mxu0 0.0
    %1379 = vmatprep.subr.mxu0 0.0
    %1380 = vmatpush1.msra.mxu0 0.0
    %1381 = vmatprep.subr.mxu0 0.0
    %1382 = vmatpush1.msra.mxu0 0.0
    %1383 = vmatprep.subr.mxu0 0.0
    %1384 = vmatpush1.msra.mxu0 0.0
    %1385 = vmatprep.subr.mxu0 0.0
    %1386 = vmatpush1.msra.mxu0 0.0
    %1387 = vmatprep.subr.mxu0 0.0
    %1388 = vmatpush1.msra.mxu0 0.0
    %1389 = vmatprep.subr.mxu0 0.0
    %1390 = vmatpush1.msra.mxu0 0.0
    %1391 = vmatprep.subr.mxu0 0.0
    %1392 = vmatpush1.msra.mxu0 0.0
    %1393 = vmatprep.subr.mxu0 0.0
    %1394 = vmatpush1.msra.mxu0 0.0
    %1395 = vmatprep.subr.mxu0 0.0
    %1396 = vmatpush1.msra.mxu0 0.0
    %1397 = vmatprep.subr.mxu0 0.0
    %1398 = vmatpush1.msra.mxu0 0.0
    %1399 = vmatprep.subr.mxu0 0.0
    %1400 = vmatpush1.msra.mxu0 0.0
    %1401 = vmatprep.subr.mxu0 0.0
    %1402 = vmatpush1.msra.mxu0 0.0
    %1403 = vmatprep.subr.mxu0 0.0
    %1404 = vmatpush1.msra.mxu0 0.0
    %1405 = vmatprep.subr.mxu0 0.0
    %1406 = vmatpush1.msra.mxu0 0.0
    %1407 = vmatprep.subr.mxu0 0.0
    %1408 = vmatpush1.msra.mxu0 0.0
    %1409 = vmatprep.subr.mxu0 0.0
    %1410 = vmatpush1.msra.mxu0 0.0
    %1411 = vmatprep.subr.mxu0 0.0
    %1412 = vmatpush1.msra.mxu0 0.0
    %1413 = vmatprep.mubr.f32.mxu0 0.0
    %1414 = vmatmul.mubr.f32.gmra.mrb[0].mxu0 %v1345
    %v1415 = vpop.f32.mrb[0].mxu0
    %v1416 = vadd.f32 0.0, %v1415
    %v1417 = vpop.f32.mrb[0].mxu0
    %1418 = vmatprep.mubr.f32.mxu0 0.0
    %1419 = vmatmul.mubr.f32.gmra.mrb[0].mxu0 %v1347
    %v1420 = vpop.f32.mrb[0].mxu0
    %v1421 = vadd.f32 0.0, %v1420
    %v1422 = vpop.f32.mrb[0].mxu0
    %1423 = vdwg.mxu0
    %v1424 = vadd.f32 %v1244, %v1329
    %v1425 = vadd.f32 %v1249, %v1334
    %1428 = vrot.lane.b32.xlu0 %v1424, 16
    %v1429 = vpop.permute.xlu0 %1428
    %1430 = vrot.lane.b32.xlu0 %v1425, 16
    %v1431 = vpop.permute.xlu0 %1430
    %vm1434 = vcmask 261248
    %1435 = vst.msk [vmem:[#allocation2] sm:$0xff] %vm1434, %v1429
    %1436 = vst.msk [vmem:[#allocation2 + $0x8] sm:$0xff] %vm1434, %v1431
    %v1437 = vsub.f32 %v1416, %v1244
    %v1438 = vsub.f32 %v1421, %v1249
    %v1439 = vadd.f32 %v1437, %v1329
    %v1440 = vadd.f32 %v1438, %v1334
    %1443 = vrot.lane.b32.xlu0 %v1439, 16
    %v1444 = vpop.permute.xlu0 %1443
    %1445 = vrot.lane.b32.xlu0 %v1440, 16
    %v1446 = vpop.permute.xlu0 %1445
    %1449 = vst.msk [vmem:[%s885] sm:$0xff] %vm1434, %v1444
    %1450 = vst.msk [vmem:[%s885 + $0x8] sm:$0xff] %vm1434, %v1446
    %v1451 = vld [vmem:[#allocation2] sm:$0xff]
    %v1452 = vld [vmem:[#allocation2 + $0x8] sm:$0xff]
    %v1453 = vld [vmem:[%s885] sm:$0xff]
    %v1454 = vld [vmem:[%s885 + $0x8] sm:$0xff]
    %1455 = vmatprep.subr.mxu0 0.0
    %1456 = vmatpush1.msra.mxu0 %v1451
    %1457 = vmatprep.subr.mxu0 0.0
    %1458 = vmatpush1.msra.mxu0 %v1452
    %1459 = vmatprep.subr.mxu0 0.0
    %1460 = vmatpush1.msra.mxu0 0.0
    %1461 = vmatprep.subr.mxu0 0.0
    %1462 = vmatpush1.msra.mxu0 0.0
    %1463 = vmatprep.subr.mxu0 0.0
    %1464 = vmatpush1.msra.mxu0 0.0
    %1465 = vmatprep.subr.mxu0 0.0
    %1466 = vmatpush1.msra.mxu0 0.0
    %1467 = vmatprep.subr.mxu0 0.0
    %1468 = vmatpush1.msra.mxu0 0.0
    %1469 = vmatprep.subr.mxu0 0.0
    %1470 = vmatpush1.msra.mxu0 0.0
    %1471 = vmatprep.subr.mxu0 0.0
    %1472 = vmatpush1.msra.mxu0 0.0
    %1473 = vmatprep.subr.mxu0 0.0
    %1474 = vmatpush1.msra.mxu0 0.0
    %1475 = vmatprep.subr.mxu0 0.0
    %1476 = vmatpush1.msra.mxu0 0.0
    %1477 = vmatprep.subr.mxu0 0.0
    %1478 = vmatpush1.msra.mxu0 0.0
    %1479 = vmatprep.subr.mxu0 0.0
    %1480 = vmatpush1.msra.mxu0 0.0
    %1481 = vmatprep.subr.mxu0 0.0
    %1482 = vmatpush1.msra.mxu0 0.0
    %1483 = vmatprep.subr.mxu0 0.0
    %1484 = vmatpush1.msra.mxu0 0.0
    %1485 = vmatprep.subr.mxu0 0.0
    %1486 = vmatpush1.msra.mxu0 0.0
    %1487 = vmatprep.subr.mxu0 0.0
    %1488 = vmatpush1.msra.mxu0 0.0
    %1489 = vmatprep.subr.mxu0 0.0
    %1490 = vmatpush1.msra.mxu0 0.0
    %1491 = vmatprep.subr.mxu0 0.0
    %1492 = vmatpush1.msra.mxu0 0.0
    %1493 = vmatprep.subr.mxu0 0.0
    %1494 = vmatpush1.msra.mxu0 0.0
    %1495 = vmatprep.subr.mxu0 0.0
    %1496 = vmatpush1.msra.mxu0 0.0
    %1497 = vmatprep.subr.mxu0 0.0
    %1498 = vmatpush1.msra.mxu0 0.0
    %1499 = vmatprep.subr.mxu0 0.0
    %1500 = vmatpush1.msra.mxu0 0.0
    %1501 = vmatprep.subr.mxu0 0.0
    %1502 = vmatpush1.msra.mxu0 0.0
    %1503 = vmatprep.subr.mxu0 0.0
    %1504 = vmatpush1.msra.mxu0 0.0
    %1505 = vmatprep.subr.mxu0 0.0
    %1506 = vmatpush1.msra.mxu0 0.0
    %1507 = vmatprep.subr.mxu0 0.0
    %1508 = vmatpush1.msra.mxu0 0.0
    %1509 = vmatprep.subr.mxu0 0.0
    %1510 = vmatpush1.msra.mxu0 0.0
    %1511 = vmatprep.subr.mxu0 0.0
    %1512 = vmatpush1.msra.mxu0 0.0
    %1513 = vmatprep.subr.mxu0 0.0
    %1514 = vmatpush1.msra.mxu0 0.0
    %1515 = vmatprep.subr.mxu0 0.0
    %1516 = vmatpush1.msra.mxu0 0.0
    %1517 = vmatprep.subr.mxu0 0.0
    %1518 = vmatpush1.msra.mxu0 0.0
    %1519 = vmatprep.mubr.f32.mxu0 0.0
    %1520 = vmatmul.mubr.f32.gmra.mrb[0].mxu0 %v114
    %v1521 = vpop.f32.mrb[0].mxu0
    %v1522 = vadd.f32 0.0, %v1521
    %v1523 = vpop.f32.mrb[0].mxu0
    %1524 = vmatprep.mubr.f32.mxu0 0.0
    %1525 = vmatmul.mubr.f32.gmra.mrb[0].mxu0 %v117
    %v1526 = vpop.f32.mrb[0].mxu0
    %v1527 = vadd.f32 0.0, %v1526
    %v1528 = vpop.f32.mrb[0].mxu0
    %1529 = vdwg.mxu0
    %1530 = vmatprep.subr.mxu0 0.0
    %1531 = vmatpush1.msra.mxu0 %v1453
    %1532 = vmatprep.subr.mxu0 0.0
    %1533 = vmatpush1.msra.mxu0 %v1454
    %1534 = vmatprep.subr.mxu0 0.0
    %1535 = vmatpush1.msra.mxu0 0.0
    %1536 = vmatprep.subr.mxu0 0.0
    %1537 = vmatpush1.msra.mxu0 0.0
    %1538 = vmatprep.subr.mxu0 0.0
    %1539 = vmatpush1.msra.mxu0 0.0
    %1540 = vmatprep.subr.mxu0 0.0
    %1541 = vmatpush1.msra.mxu0 0.0
    %1542 = vmatprep.subr.mxu0 0.0
    %1543 = vmatpush1.msra.mxu0 0.0
    %1544 = vmatprep.subr.mxu0 0.0
    %1545 = vmatpush1.msra.mxu0 0.0
    %1546 = vmatprep.subr.mxu0 0.0
    %1547 = vmatpush1.msra.mxu0 0.0
    %1548 = vmatprep.subr.mxu0 0.0
    %1549 = vmatpush1.msra.mxu0 0.0
    %1550 = vmatprep.subr.mxu0 0.0
    %1551 = vmatpush1.msra.mxu0 0.0
    %1552 = vmatprep.subr.mxu0 0.0
    %1553 = vmatpush1.msra.mxu0 0.0
    %1554 = vmatprep.subr.mxu0 0.0
    %1555 = vmatpush1.msra.mxu0 0.0
    %1556 = vmatprep.subr.mxu0 0.0
    %1557 = vmatpush1.msra.mxu0 0.0
    %1558 = vmatprep.subr.mxu0 0.0
    %1559 = vmatpush1.msra.mxu0 0.0
    %1560 = vmatprep.subr.mxu0 0.0
    %1561 = vmatpush1.msra.mxu0 0.0
    %1562 = vmatprep.subr.mxu0 0.0
    %1563 = vmatpush1.msra.mxu0 0.0
    %1564 = vmatprep.subr.mxu0 0.0
    %1565 = vmatpush1.msra.mxu0 0.0
    %1566 = vmatprep.subr.mxu0 0.0
    %1567 = vmatpush1.msra.mxu0 0.0
    %1568 = vmatprep.subr.mxu0 0.0
    %1569 = vmatpush1.msra.mxu0 0.0
    %1570 = vmatprep.subr.mxu0 0.0
    %1571 = vmatpush1.msra.mxu0 0.0
    %1572 = vmatprep.subr.mxu0 0.0
    %1573 = vmatpush1.msra.mxu0 0.0
    %1574 = vmatprep.subr.mxu0 0.0
    %1575 = vmatpush1.msra.mxu0 0.0
    %1576 = vmatprep.subr.mxu0 0.0
    %1577 = vmatpush1.msra.mxu0 0.0
    %1578 = vmatprep.subr.mxu0 0.0
    %1579 = vmatpush1.msra.mxu0 0.0
    %1580 = vmatprep.subr.mxu0 0.0
    %1581 = vmatpush1.msra.mxu0 0.0
    %1582 = vmatprep.subr.mxu0 0.0
    %1583 = vmatpush1.msra.mxu0 0.0
    %1584 = vmatprep.subr.mxu0 0.0
    %1585 = vmatpush1.msra.mxu0 0.0
    %1586 = vmatprep.subr.mxu0 0.0
    %1587 = vmatpush1.msra.mxu0 0.0
    %1588 = vmatprep.subr.mxu0 0.0
    %1589 = vmatpush1.msra.mxu0 0.0
    %1590 = vmatprep.subr.mxu0 0.0
    %1591 = vmatpush1.msra.mxu0 0.0
    %1592 = vmatprep.subr.mxu0 0.0
    %1593 = vmatpush1.msra.mxu0 0.0
    %1594 = vmatprep.mubr.f32.mxu0 0.0
    %1595 = vmatmul.mubr.f32.gmra.mrb[0].mxu0 %v195
    %v1596 = vpop.f32.mrb[0].mxu0
    %v1597 = vadd.f32 0.0, %v1596
    %v1598 = vpop.f32.mrb[0].mxu0
    %1599 = vmatprep.mubr.f32.mxu0 0.0
    %1600 = vmatmul.mubr.f32.gmra.mrb[0].mxu0 %v198
    %v1601 = vpop.f32.mrb[0].mxu0
    %v1602 = vadd.f32 0.0, %v1601
    %v1603 = vpop.f32.mrb[0].mxu0
    %1604 = vdwg.mxu0
    %v1605 = vadd.f32 %v1451, %v1453
    %v1606 = vadd.f32 %v1452, %v1454
    %v1608 = vsel %vm112, %v101, 0
    %v1611 = vsel %vm112, %v102, 0
    %1613 = vmatprep.subr.mxu0 0.0
    %1614 = vmatpush1.msra.mxu0 %v1605
    %1615 = vmatprep.subr.mxu0 0.0
    %1616 = vmatpush1.msra.mxu0 %v1606
    %1617 = vmatprep.subr.mxu0 0.0
    %1618 = vmatpush1.msra.mxu0 0.0
    %1619 = vmatprep.subr.mxu0 0.0
    %1620 = vmatpush1.msra.mxu0 0.0
    %1621 = vmatprep.subr.mxu0 0.0
    %1622 = vmatpush1.msra.mxu0 0.0
    %1623 = vmatprep.subr.mxu0 0.0
    %1624 = vmatpush1.msra.mxu0 0.0
    %1625 = vmatprep.subr.mxu0 0.0
    %1626 = vmatpush1.msra.mxu0 0.0
    %1627 = vmatprep.subr.mxu0 0.0
    %1628 = vmatpush1.msra.mxu0 0.0
    %1629 = vmatprep.subr.mxu0 0.0
    %1630 = vmatpush1.msra.mxu0 0.0
    %1631 = vmatprep.subr.mxu0 0.0
    %1632 = vmatpush1.msra.mxu0 0.0
    %1633 = vmatprep.subr.mxu0 0.0
    %1634 = vmatpush1.msra.mxu0 0.0
    %1635 = vmatprep.subr.mxu0 0.0
    %1636 = vmatpush1.msra.mxu0 0.0
    %1637 = vmatprep.subr.mxu0 0.0
    %1638 = vmatpush1.msra.mxu0 0.0
    %1639 = vmatprep.subr.mxu0 0.0
    %1640 = vmatpush1.msra.mxu0 0.0
    %1641 = vmatprep.subr.mxu0 0.0
    %1642 = vmatpush1.msra.mxu0 0.0
    %1643 = vmatprep.subr.mxu0 0.0
    %1644 = vmatpush1.msra.mxu0 0.0
    %1645 = vmatprep.subr.mxu0 0.0
    %1646 = vmatpush1.msra.mxu0 0.0
    %1647 = vmatprep.subr.mxu0 0.0
    %1648 = vmatpush1.msra.mxu0 0.0
    %1649 = vmatprep.subr.mxu0 0.0
    %1650 = vmatpush1.msra.mxu0 0.0
    %1651 = vmatprep.subr.mxu0 0.0
    %1652 = vmatpush1.msra.mxu0 0.0
    %1653 = vmatprep.subr.mxu0 0.0
    %1654 = vmatpush1.msra.mxu0 0.0
    %1655 = vmatprep.subr.mxu0 0.0
    %1656 = vmatpush1.msra.mxu0 0.0
    %1657 = vmatprep.subr.mxu0 0.0
    %1658 = vmatpush1.msra.mxu0 0.0
    %1659 = vmatprep.subr.mxu0 0.0
    %1660 = vmatpush1.msra.mxu0 0.0
    %1661 = vmatprep.subr.mxu0 0.0
    %1662 = vmatpush1.msra.mxu0 0.0
    %1663 = vmatprep.subr.mxu0 0.0
    %1664 = vmatpush1.msra.mxu0 0.0
    %1665 = vmatprep.subr.mxu0 0.0
    %1666 = vmatpush1.msra.mxu0 0.0
    %1667 = vmatprep.subr.mxu0 0.0
    %1668 = vmatpush1.msra.mxu0 0.0
    %1669 = vmatprep.subr.mxu0 0.0
    %1670 = vmatpush1.msra.mxu0 0.0
    %1671 = vmatprep.subr.mxu0 0.0
    %1672 = vmatpush1.msra.mxu0 0.0
    %1673 = vmatprep.subr.mxu0 0.0
    %1674 = vmatpush1.msra.mxu0 0.0
    %1675 = vmatprep.subr.mxu0 0.0
    %1676 = vmatpush1.msra.mxu0 0.0
    %1677 = vmatprep.mubr.f32.mxu0 0.0
    %1678 = vmatmul.mubr.f32.gmra.mrb[0].mxu0 %v1608
    %v1679 = vpop.f32.mrb[0].mxu0
    %v1680 = vadd.f32 0.0, %v1679
    %v1681 = vpop.f32.mrb[0].mxu0
    %1682 = vmatprep.mubr.f32.mxu0 0.0
    %1683 = vmatmul.mubr.f32.gmra.mrb[0].mxu0 %v1611
    %v1684 = vpop.f32.mrb[0].mxu0
    %v1685 = vadd.f32 0.0, %v1684
    %v1686 = vpop.f32.mrb[0].mxu0
    %1687 = vdwg.mxu0
    %v1688 = vadd.f32 %v1522, %v1597
    %v1689 = vadd.f32 %v1527, %v1602
    %vm1690 = vcmask 261120
    %1691 = vst.msk [vmem:[#allocation12] sm:$0xff] %vm1690, %v1688
    %1692 = vst.msk [vmem:[#allocation12 + $0x8] sm:$0xff] %vm1690, %v1689
    %v1693 = vsub.f32 %v1680, %v1522
    %v1694 = vsub.f32 %v1685, %v1527
    %v1695 = vadd.f32 %v1693, %v1597
    %v1696 = vadd.f32 %v1694, %v1602
    %s1697 = scalar_lea.vmem [#allocation12], 16
    %1698 = vst.msk [vmem:[%s1697] sm:$0xff] %vm1690, %v1695
    %1699 = vst.msk [vmem:[%s1697 + $0x8] sm:$0xff] %vm1690, %v1696
    // Predicated region
    $region42: #{tpu_custom_call.1} parent=1 // pred_check
      _
    $region43: #{tpu_custom_call.1} parent=1 // pred_check_branch
      %1701 = sbr.rel (0) target = $region45
    $region44: #{tpu_custom_call.1} parent=1 // pred_region
      %s1703 = ssub.s32 512, 512
      %1704 = vsyncadd [#allocation5], %s1703
      %s1705 = sshll.u32 [#allocation12], 4
      %s1706 = int_to_ptr.vmem [resolvable:$true] %s1705
      %1711 = dma.vmem_to_hbm [thread:$0]  %s1706, 512, %s5, [#allocation5], 128, 128, 8
    $region45: #{tpu_custom_call.1} parent=1 // pred_fallthru
      _
    // Predicated region
    $region46: #{tpu_custom_call.1} parent=1 // pred_check
      _
    $region47: #{tpu_custom_call.1} parent=1 // pred_check_branch
      %1713 = sbr.rel (0) target = $region49
    $region48: #{tpu_custom_call.1} parent=1 // pred_region
      %1714 = dma.done [#allocation5], 512
    $region49: #{tpu_custom_call.1} parent=1 // pred_fallthru
      _
    %1715 = vsyncpa [#allocation4], 1
    %1716 = vsyncpa [#allocation7], 1
    %1717 = vsyncpa [#allocation10], 1
    %1718 = vsyncpa [#allocation5], 1

</llo_original>
